<compile_context>
chip_gen: v7x
topology: tpu7x:2x2x1
jax: 0.10.0
libtpu: 0.0.40
codegen_flags: <defaults>
</compile_context>

<pallas_src>
import jax
import jax.numpy as jnp
from jax.experimental import pallas as pl
from jax.experimental.pallas import tpu as pltpu


def _round_up(x, m):
    return ((x + m - 1) // m) * m


# ----------------------------------------------------------------------------
# Pallas kernels
# ----------------------------------------------------------------------------
def _fused_conv_kernel(x_ref,
                       w1_ref, s1_ref, b1_ref,
                       w2_ref, s2_ref, b2_ref,
                       w3_ref, s3_ref, b3_ref,
                       w4_ref, s4_ref, b4_ref,
                       sf_ref, bf_ref,
                       o_ref,
                       pad2_ref, pad3_ref, pad4_ref):
    """Whole conv stack for a batch tile.

    x_ref   : [TB, Hp, W0*C0] bf16   height-padded input, (w, c) merged on lanes
    w*_ref  : [kh, Win*Cin, 2*Wo*Cout] bf16  block-Toeplitz conv weights
              (even pooled columns in lanes [:Wo*Cout], odd in [Wo*Cout:])
    s*/b*   : [1, Wo*Cout] f32       folded BN2d scale/shift (conv bias included)
    sf/bf   : [H, Wo4*C4]  f32       BatchNorm1d affine permuted to NHWC layout
    o_ref   : [TB, H, Wo4*C4] f32    features (flat + BN1d), NHWC flatten order
    pad*_ref: [Hp, W*C] bf16 scratch height-padded intermediate activations
    """
    tb = x_ref.shape[0]

    def conv_bn_relu_pool(xp, w_ref, s_ref, b_ref):
        kh = w_ref.shape[0]
        h = xp.shape[0] - (kh - 1)
        ncol = s_ref.shape[1]
        acc = jnp.zeros((h, 2 * ncol), jnp.float32)
        for di in range(kh):                      # kh shifted matmuls, f32 accum
            acc = acc + jnp.dot(xp[di:di + h, :], w_ref[di],
                                preferred_element_type=jnp.float32)
        s = s_ref[...]
        b = b_ref[...]
        ye = acc[:, :ncol] * s + b                # even pooled columns
        yo = acc[:, ncol:] * s + b                # odd pooled columns
        # BN(scale may be negative) before max; relu(max) == max(relu) so this
        # matches Conv -> BN -> ReLU -> MaxPool2d((1,2)).
        return jnp.maximum(jnp.maximum(ye, yo), 0.0)

    def stash(pad_ref, z):
        # Write z into the height-padded VMEM scratch (borders zero) and reload.
        pad_ref[...] = jnp.zeros_like(pad_ref)
        pad_ref[1:1 + z.shape[0], :] = z.astype(pad_ref.dtype)
        return pad_ref[...]

    for t in range(tb):
        z = conv_bn_relu_pool(x_ref[t], w1_ref, s1_ref, b1_ref)
        z = conv_bn_relu_pool(stash(pad2_ref, z), w2_ref, s2_ref, b2_ref)
        z = conv_bn_relu_pool(stash(pad3_ref, z), w3_ref, s3_ref, b3_ref)
        z = conv_bn_relu_pool(stash(pad4_ref, z), w4_ref, s4_ref, b4_ref)
        # Flatten + BatchNorm1d (eval) as a per-position affine in NHWC layout.
        o_ref[t] = z * sf_ref[...] + bf_ref[...]


def _dense_kernel(x_ref, w1_ref, b1_ref, w2_ref, b2_ref, w3_ref, b3_ref, o_ref):
    """Fused MLP head: Linear+ReLU -> Linear+ReLU -> Linear -> Softmax(dim=1).

    Dropout layers are identity (eval mode).  bf16 MXU matmuls, f32 accumulation,
    exact softmax normalization.
    """
    hdn = jnp.dot(x_ref[...], w1_ref[...],
                  preferred_element_type=jnp.float32) + b1_ref[...]
    hdn = jnp.maximum(hdn, 0.0)
    hdn = jnp.dot(hdn.astype(jnp.bfloat16), w2_ref[...],
                  preferred_element_type=jnp.float32) + b2_ref[...]
    hdn = jnp.maximum(hdn, 0.0)
    logits = jnp.dot(hdn.astype(jnp.bfloat16), w3_ref[...],
                     preferred_element_type=jnp.float32) + b3_ref[...]
    m = jnp.max(logits, axis=-1, keepdims=True)
    e = jnp.exp(logits - m)
    o_ref[...] = e / jnp.sum(e, axis=-1, keepdims=True)   # exact normalization


_PARALLEL_1D = pltpu.CompilerParams(dimension_semantics=("parallel",))


# ----------------------------------------------------------------------------
# Host-side parameter plumbing
# ----------------------------------------------------------------------------
def _build_toeplitz(wconv, win):
    """wconv: [kh, kw, cin, cout].  Returns [kh, win*cin, 2*wo*cout].

    For each height offset di the width convolution ('same' zero padding baked
    in) and the even/odd MaxPool((1,2)) split are unrolled into a block-Toeplitz
    matrix, so the kernel only needs kh plain matmuls per layer.
    """
    kh, kw, cin, cout = wconv.shape
    wo = win // 2
    pw = (kw - 1) // 2
    c_idx = jnp.arange(2 * wo)
    wout = 2 * (c_idx % wo) + (c_idx // wo)          # even columns first, then odd
    dj = jnp.arange(kw)[:, None, None]
    wi = jnp.arange(win)[None, :, None]
    sel = (wi == (wout[None, None, :] + dj - pw)).astype(wconv.dtype)   # [kw, win, 2wo]
    wcat = jnp.einsum('jwc,djio->dwico', sel, wconv)  # [kh, win, cin, 2wo, cout]
    return wcat.reshape(kh, win * cin, 2 * wo * cout)


# ----------------------------------------------------------------------------
# Wrappers
# ----------------------------------------------------------------------------
def fused_conv_stack(x_nchw, params):
    """Four Conv-BN-ReLU-MaxPool stages + Flatten/BatchNorm1d in one pallas_call.

    Returns features in NHWC (h, w, c) flatten layout: [N, H, Wo4*C4] f32.
    """
    n, cin0, h, w0 = x_nchw.shape
    enc = params["enc"]                              # list of (wconv, scale, shift)
    assert len(enc) == 4
    kh0 = enc[0][0].shape[0]
    assert kh0 % 2 == 1 and all(e[0].shape[0] == kh0 for e in enc)
    ph = (kh0 - 1) // 2
    hp = h + 2 * ph

    # Toeplitz conv matrices, tiled BN2d affines, scratch specs (plumbing only).
    layer_args, specs_w, pads = [], [], []
    win = w0
    for idx, (wconv, scale, shift) in enumerate(enc):
        cin = wconv.shape[2]
        cout = wconv.shape[3]
        wo = win // 2
        ncol = wo * cout
        k = win * cin
        wcat = _build_toeplitz(wconv, win).astype(jnp.bfloat16)
        s_t = jnp.tile(scale, wo).reshape(1, ncol).astype(jnp.float32)
        b_t = jnp.tile(shift, wo).reshape(1, ncol).astype(jnp.float32)
        layer_args += [wcat, s_t, b_t]
        specs_w += [
            pl.BlockSpec((kh0, k, 2 * ncol), lambda i: (0, 0, 0)),   # weights resident
            pl.BlockSpec((1, ncol), lambda i: (0, 0)),
            pl.BlockSpec((1, ncol), lambda i: (0, 0)),
        ]
        if idx > 0:                                  # height-padded input scratch
            pads.append(pltpu.VMEM((hp, k), jnp.bfloat16))
        win = wo

    wo4 = win
    c4 = enc[-1][0].shape[3]
    ncolf = wo4 * c4

    # BatchNorm1d params (PyTorch NCHW-flatten order) permuted to NHWC layout.
    bn_s, bn_b = params["bn1d"]
    sf = bn_s.reshape(c4, h, wo4).transpose(1, 2, 0).reshape(h, ncolf).astype(jnp.float32)
    bf = bn_b.reshape(c4, h, wo4).transpose(1, 2, 0).reshape(h, ncolf).astype(jnp.float32)

    # Batch tiling: per-sample grid for small N (>=2 grid steps on v7x megacore).
    tb = 1 if n <= 8 else 8
    n_pad = _round_up(n, tb)

    x = jnp.transpose(x_nchw, (0, 2, 3, 1))                        # NCHW -> NHWC (once)
    x = jnp.pad(x, ((0, n_pad - n), (ph, ph), (0, 0), (0, 0)))     # batch + height pad
    x = x.reshape(n_pad, hp, w0 * cin0).astype(jnp.bfloat16)       # merge (w, c) on lanes

    out = pl.pallas_call(
        _fused_conv_kernel,
        out_shape=jax.ShapeDtypeStruct((n_pad, h, ncolf), jnp.float32),
        grid=(n_pad // tb,),
        in_specs=[pl.BlockSpec((tb, hp, w0 * cin0), lambda i: (i, 0, 0))] + specs_w + [
            pl.BlockSpec((h, ncolf), lambda i: (0, 0)),
            pl.BlockSpec((h, ncolf), lambda i: (0, 0)),
        ],
        out_specs=pl.BlockSpec((tb, h, ncolf), lambda i: (i, 0, 0)),
        scratch_shapes=pads,
        compiler_params=_PARALLEL_1D,                # resident weights ~1 MiB: fits
    )(x, *layer_args, sf, bf)                        # every generation's default VMEM
    return out[:n]


def dense_head(feats_nhwc, params, h, wf, c):
    """MLP head on NHWC-flattened (already BatchNorm1d'd) features."""
    n, feat = feats_nhwc.shape
    w1, b1 = params["lin1"]
    w2, b2 = params["lin2"]
    w3, b3 = params["lin3"]
    hid1 = w1.shape[1]

    # Fold the NCHW-flatten -> NHWC-flatten permutation into lin1's rows.
    w1_eff = w1.reshape(c, h, wf, hid1).transpose(1, 2, 0, 3).reshape(feat, hid1)

    hid2 = w2.shape[1]
    hid2_p = _round_up(hid2, 128)                    # 100 -> 128 lanes (zero pad)
    w2p = jnp.pad(w2, ((0, 0), (0, hid2_p - hid2)))
    b2p = jnp.pad(b2, (0, hid2_p - hid2))
    w3p = jnp.pad(w3, ((0, hid2_p - hid2), (0, 0)))
    out_size = w3.shape[1]

    n_pad = _round_up(n, 8)
    tile_n = min(256, n_pad)
    if n_pad // tile_n < 2 and n_pad >= 16:          # >=2 grid steps for v7x when possible
        tile_n = max(8, _round_up(n_pad // 2, 8))
    n_pad = _round_up(n_pad, tile_n)
    x = jnp.pad(feats_nhwc, ((0, n_pad - n), (0, 0))).astype(jnp.bfloat16)

    out = pl.pallas_call(
        _dense_kernel,
        out_shape=jax.ShapeDtypeStruct((n_pad, out_size), jnp.float32),
        grid=(n_pad // tile_n,),
        in_specs=[
            pl.BlockSpec((tile_n, feat), lambda i: (i, 0)),
            pl.BlockSpec((feat, hid1), lambda i: (0, 0)),     # weights resident
            pl.BlockSpec((1, hid1), lambda i: (0, 0)),
            pl.BlockSpec((hid1, hid2_p), lambda i: (0, 0)),
            pl.BlockSpec((1, hid2_p), lambda i: (0, 0)),
            pl.BlockSpec((hid2_p, out_size), lambda i: (0, 0)),
            pl.BlockSpec((1, out_size), lambda i: (0, 0)),
        ],
        out_specs=pl.BlockSpec((tile_n, out_size), lambda i: (i, 0)),
        compiler_params=_PARALLEL_1D,
    )(
        x,
        w1_eff.astype(jnp.bfloat16), b1.reshape(1, hid1),
        w2p.astype(jnp.bfloat16), b2p.reshape(1, hid2_p),
        w3p.astype(jnp.bfloat16), b3.reshape(1, out_size),
    )
    return out[:n]


def cnn_forward(x_nchw, params, use_metric):
    feats = fused_conv_stack(x_nchw, params)         # [N, H, Wo*C] f32, BN1d applied
    n, h, ncolf = feats.shape
    c = params["enc"][-1][0].shape[3]
    wf = ncolf // c
    if use_metric:
        # Reorder NHWC flatten -> PyTorch NCHW flatten (tiny output-side reorder).
        return feats.reshape(n, h, wf, c).transpose(0, 3, 1, 2).reshape(n, h * wf * c)
    return dense_head(feats.reshape(n, h * wf * c), params, h, wf, c)


# ----------------------------------------------------------------------------
# Deterministic synthetic parameter init (shapes from CNN.__init__)
# ----------------------------------------------------------------------------
def _fold_bn(gamma, beta, mean, var, conv_bias=None, eps=1e-5):
    scale = gamma / jnp.sqrt(var + eps)
    shift = beta - mean * scale
    if conv_bias is not None:
        shift = shift + conv_bias * scale
    return scale, shift


def init_params(key, in_size, feat_size, out_size):
    k = [key]

    def nxt():
        k[0], sub = jax.random.split(k[0])
        return sub

    params = {"enc": []}
    configs = [(in_size, 16, 3, 5), (16, 32, 3, 3), (32, 64, 3, 3), (64, 128, 3, 3)]
    for cin, cout, kh, kw in configs:
        w = 0.1 * jax.random.normal(nxt(), (kh, kw, cin, cout), jnp.float32)
        conv_b = 0.05 * jax.random.normal(nxt(), (cout,), jnp.float32)
        gamma = 1.0 + 0.1 * jax.random.normal(nxt(), (cout,), jnp.float32)
        beta = 0.1 * jax.random.normal(nxt(), (cout,), jnp.float32)
        mean = 0.1 * jax.random.normal(nxt(), (cout,), jnp.float32)
        var = 0.5 + jax.random.uniform(nxt(), (cout,), jnp.float32)
        scale, shift = _fold_bn(gamma, beta, mean, var, conv_b)
        params["enc"].append((w, scale, shift))

    gamma = 1.0 + 0.1 * jax.random.normal(nxt(), (feat_size,), jnp.float32)
    beta = 0.1 * jax.random.normal(nxt(), (feat_size,), jnp.float32)
    mean = 0.1 * jax.random.normal(nxt(), (feat_size,), jnp.float32)
    var = 0.5 + jax.random.uniform(nxt(), (feat_size,), jnp.float32)
    params["bn1d"] = _fold_bn(gamma, beta, mean, var)

    def linear(cin, cout):
        w = jax.random.normal(nxt(), (cin, cout), jnp.float32) / jnp.sqrt(float(cin))
        b = 0.01 * jax.random.normal(nxt(), (cout,), jnp.float32)
        return w, b

    params["lin1"] = linear(feat_size, 512)
    params["lin2"] = linear(512, 100)
    params["lin3"] = linear(100, out_size)
    return params


# ----------------------------------------------------------------------------
if __name__ == "__main__":
    key = jax.random.PRNGKey(0)
    N, IN_SIZE, H, W = 2, 4, 4, 16
    OUT_SIZE = 10
    # After four MaxPool2d((1,2)) stages: W -> W/16, channels -> 128.
    FEAT_SIZE = 128 * H * (W // 16)

    k_x, k_p = jax.random.split(key)
    x = jax.random.normal(k_x, (N, IN_SIZE, H, W), jnp.float32)   # NCHW like PyTorch
    params = init_params(k_p, IN_SIZE, FEAT_SIZE, OUT_SIZE)

    out = jax.block_until_ready(cnn_forward(x, params, use_metric=False))
    assert out.shape == (N, OUT_SIZE)
    assert bool(jnp.all(jnp.isfinite(out)))
    assert bool(jnp.allclose(jnp.sum(out, axis=1), 1.0, atol=1e-3))   # exact softmax divide

    feat = jax.block_until_ready(cnn_forward(x, params, use_metric=True))
    assert feat.shape == (N, FEAT_SIZE)
    assert bool(jnp.all(jnp.isfinite(feat)))

    print("KERNEL_OK")
</pallas_src>

<mosaic_0001>
module attributes {stable_mosaic.version = 11 : i64} {
  func.func @_fused_conv_kernel(%arg0: i32, %arg1: memref<1x6x64xbf16, #tpu.memory_space<vmem>>, %arg2: memref<3x64x256xbf16, #tpu.memory_space<vmem>>, %arg3: memref<1x128xf32, #tpu.memory_space<vmem>>, %arg4: memref<1x128xf32, #tpu.memory_space<vmem>>, %arg5: memref<3x128x256xbf16, #tpu.memory_space<vmem>>, %arg6: memref<1x128xf32, #tpu.memory_space<vmem>>, %arg7: memref<1x128xf32, #tpu.memory_space<vmem>>, %arg8: memref<3x128x256xbf16, #tpu.memory_space<vmem>>, %arg9: memref<1x128xf32, #tpu.memory_space<vmem>>, %arg10: memref<1x128xf32, #tpu.memory_space<vmem>>, %arg11: memref<3x128x256xbf16, #tpu.memory_space<vmem>>, %arg12: memref<1x128xf32, #tpu.memory_space<vmem>>, %arg13: memref<1x128xf32, #tpu.memory_space<vmem>>, %arg14: memref<4x128xf32, #tpu.memory_space<vmem>>, %arg15: memref<4x128xf32, #tpu.memory_space<vmem>>, %arg16: memref<1x4x128xf32, #tpu.memory_space<vmem>>, %arg17: memref<6x128xbf16, #tpu.memory_space<vmem>>, %arg18: memref<6x128xbf16, #tpu.memory_space<vmem>>, %arg19: memref<6x128xbf16, #tpu.memory_space<vmem>>) attributes {dimension_semantics = [#tpu.dimension_semantics<parallel>], iteration_bounds = array<i64: 2>, scalar_prefetch = 0 : i64, scratch_operands = 3 : i64, tpu.core_type = #tpu.core_type<tc>, window_params = [{transform_indices = @transform_0, window_bounds = array<i64: 1, 6, 64>}, {pipeline_mode = #tpu.pipeline_mode<synchronous>, transform_indices = @transform_1, window_bounds = array<i64: 3, 64, 256>}, {pipeline_mode = #tpu.pipeline_mode<synchronous>, transform_indices = @transform_2, window_bounds = array<i64: 1, 128>}, {pipeline_mode = #tpu.pipeline_mode<synchronous>, transform_indices = @transform_3, window_bounds = array<i64: 1, 128>}, {pipeline_mode = #tpu.pipeline_mode<synchronous>, transform_indices = @transform_4, window_bounds = array<i64: 3, 128, 256>}, {pipeline_mode = #tpu.pipeline_mode<synchronous>, transform_indices = @transform_5, window_bounds = array<i64: 1, 128>}, {pipeline_mode = #tpu.pipeline_mode<synchronous>, transform_indices = @transform_6, window_bounds = array<i64: 1, 128>}, {pipeline_mode = #tpu.pipeline_mode<synchronous>, transform_indices = @transform_7, window_bounds = array<i64: 3, 128, 256>}, {pipeline_mode = #tpu.pipeline_mode<synchronous>, transform_indices = @transform_8, window_bounds = array<i64: 1, 128>}, {pipeline_mode = #tpu.pipeline_mode<synchronous>, transform_indices = @transform_9, window_bounds = array<i64: 1, 128>}, {pipeline_mode = #tpu.pipeline_mode<synchronous>, transform_indices = @transform_10, window_bounds = array<i64: 3, 128, 256>}, {pipeline_mode = #tpu.pipeline_mode<synchronous>, transform_indices = @transform_11, window_bounds = array<i64: 1, 128>}, {pipeline_mode = #tpu.pipeline_mode<synchronous>, transform_indices = @transform_12, window_bounds = array<i64: 1, 128>}, {pipeline_mode = #tpu.pipeline_mode<synchronous>, transform_indices = @transform_13, window_bounds = array<i64: 4, 128>}, {pipeline_mode = #tpu.pipeline_mode<synchronous>, transform_indices = @transform_14, window_bounds = array<i64: 4, 128>}, {transform_indices = @transform_15, window_bounds = array<i64: 1, 4, 128>}]} {
    %c0 = arith.constant 0 : index
    %c0_0 = arith.constant 0 : index
    %c0_1 = arith.constant 0 : index
    %0 = vector.load %arg1[%c0, %c0_0, %c0_1] : memref<1x6x64xbf16, #tpu.memory_space<vmem>>, vector<1x6x64xbf16>
    %1 = vector.shape_cast %0 : vector<1x6x64xbf16> to vector<6x64xbf16>
    %cst = arith.constant 0.000000e+00 : f32
    %2 = vector.broadcast %cst : f32 to vector<4x256xf32>
    %3 = vector.extract_strided_slice %1 {offsets = [0, 0], sizes = [4, 64], strides = [1, 1]} : vector<6x64xbf16> to vector<4x64xbf16>
    %c0_2 = arith.constant 0 : index
    %c0_3 = arith.constant 0 : index
    %c0_4 = arith.constant 0 : index
    %4 = vector.load %arg2[%c0_2, %c0_3, %c0_4] : memref<3x64x256xbf16, #tpu.memory_space<vmem>>, vector<1x64x256xbf16>
    %5 = vector.shape_cast %4 : vector<1x64x256xbf16> to vector<64x256xbf16>
    %cst_5 = arith.constant dense<0.000000e+00> : vector<4x256xf32>
    %6 = tpu.matmul %3, %5, %cst_5 {dimension_numbers = #tpu.dot_dimension_numbers<[1], [0], [0], [1], [0, 0, 1, 1], [], []>} : vector<4x64xbf16>, vector<64x256xbf16>, vector<4x256xf32> -> vector<4x256xf32>
    %7 = arith.addf %2, %6 : vector<4x256xf32>
    %8 = vector.extract_strided_slice %1 {offsets = [1, 0], sizes = [4, 64], strides = [1, 1]} : vector<6x64xbf16> to vector<4x64xbf16>
    %c1 = arith.constant 1 : index
    %c0_6 = arith.constant 0 : index
    %c0_7 = arith.constant 0 : index
    %9 = vector.load %arg2[%c1, %c0_6, %c0_7] : memref<3x64x256xbf16, #tpu.memory_space<vmem>>, vector<1x64x256xbf16>
    %10 = vector.shape_cast %9 : vector<1x64x256xbf16> to vector<64x256xbf16>
    %cst_8 = arith.constant dense<0.000000e+00> : vector<4x256xf32>
    %11 = tpu.matmul %8, %10, %cst_8 {dimension_numbers = #tpu.dot_dimension_numbers<[1], [0], [0], [1], [0, 0, 1, 1], [], []>} : vector<4x64xbf16>, vector<64x256xbf16>, vector<4x256xf32> -> vector<4x256xf32>
    %12 = arith.addf %7, %11 : vector<4x256xf32>
    %13 = vector.extract_strided_slice %1 {offsets = [2, 0], sizes = [4, 64], strides = [1, 1]} : vector<6x64xbf16> to vector<4x64xbf16>
    %c2 = arith.constant 2 : index
    %c0_9 = arith.constant 0 : index
    %c0_10 = arith.constant 0 : index
    %14 = vector.load %arg2[%c2, %c0_9, %c0_10] : memref<3x64x256xbf16, #tpu.memory_space<vmem>>, vector<1x64x256xbf16>
    %15 = vector.shape_cast %14 : vector<1x64x256xbf16> to vector<64x256xbf16>
    %cst_11 = arith.constant dense<0.000000e+00> : vector<4x256xf32>
    %16 = tpu.matmul %13, %15, %cst_11 {dimension_numbers = #tpu.dot_dimension_numbers<[1], [0], [0], [1], [0, 0, 1, 1], [], []>} : vector<4x64xbf16>, vector<64x256xbf16>, vector<4x256xf32> -> vector<4x256xf32>
    %17 = arith.addf %12, %16 : vector<4x256xf32>
    %c0_12 = arith.constant 0 : index
    %c0_13 = arith.constant 0 : index
    %18 = vector.load %arg3[%c0_12, %c0_13] : memref<1x128xf32, #tpu.memory_space<vmem>>, vector<1x128xf32>
    %c0_14 = arith.constant 0 : index
    %c0_15 = arith.constant 0 : index
    %19 = vector.load %arg4[%c0_14, %c0_15] : memref<1x128xf32, #tpu.memory_space<vmem>>, vector<1x128xf32>
    %20 = vector.extract_strided_slice %17 {offsets = [0, 0], sizes = [4, 128], strides = [1, 1]} : vector<4x256xf32> to vector<4x128xf32>
    %21 = vector.broadcast %18 : vector<1x128xf32> to vector<4x128xf32>
    %22 = arith.mulf %20, %21 : vector<4x128xf32>
    %23 = vector.broadcast %19 : vector<1x128xf32> to vector<4x128xf32>
    %24 = arith.addf %22, %23 : vector<4x128xf32>
    %25 = vector.extract_strided_slice %17 {offsets = [0, 128], sizes = [4, 128], strides = [1, 1]} : vector<4x256xf32> to vector<4x128xf32>
    %26 = vector.broadcast %18 : vector<1x128xf32> to vector<4x128xf32>
    %27 = arith.mulf %25, %26 : vector<4x128xf32>
    %28 = vector.broadcast %19 : vector<1x128xf32> to vector<4x128xf32>
    %29 = arith.addf %27, %28 : vector<4x128xf32>
    %30 = arith.maximumf %24, %29 : vector<4x128xf32>
    %cst_16 = arith.constant 0.000000e+00 : f32
    %31 = vector.broadcast %cst_16 : f32 to vector<4x128xf32>
    %32 = arith.maximumf %30, %31 : vector<4x128xf32>
    %cst_17 = arith.constant 0.000000e+00 : bf16
    %33 = vector.broadcast %cst_17 : bf16 to vector<6x128xbf16>
    %c0_18 = arith.constant 0 : index
    %c0_19 = arith.constant 0 : index
    %34 = vector.load %arg17[%c0_18, %c0_19] : memref<6x128xbf16, #tpu.memory_space<vmem>>, vector<6x128xbf16>
    tpu.vector_store %arg17[%c0_18, %c0_19], %33 {strides = array<i32>} : memref<6x128xbf16, #tpu.memory_space<vmem>>, vector<6x128xbf16>,
    %35 = arith.truncf %32 : vector<4x128xf32> to vector<4x128xbf16>
    %c1_20 = arith.constant 1 : index
    %c0_21 = arith.constant 0 : index
    %36 = vector.load %arg17[%c1_20, %c0_21] : memref<6x128xbf16, #tpu.memory_space<vmem>>, vector<4x128xbf16>
    tpu.vector_store %arg17[%c1_20, %c0_21], %35 {strides = array<i32>} : memref<6x128xbf16, #tpu.memory_space<vmem>>, vector<4x128xbf16>,
    %c0_22 = arith.constant 0 : index
    %c0_23 = arith.constant 0 : index
    %37 = vector.load %arg17[%c0_22, %c0_23] : memref<6x128xbf16, #tpu.memory_space<vmem>>, vector<6x128xbf16>
    %cst_24 = arith.constant 0.000000e+00 : f32
    %38 = vector.broadcast %cst_24 : f32 to vector<4x256xf32>
    %39 = vector.extract_strided_slice %37 {offsets = [0, 0], sizes = [4, 128], strides = [1, 1]} : vector<6x128xbf16> to vector<4x128xbf16>
    %c0_25 = arith.constant 0 : index
    %c0_26 = arith.constant 0 : index
    %c0_27 = arith.constant 0 : index
    %40 = vector.load %arg5[%c0_25, %c0_26, %c0_27] : memref<3x128x256xbf16, #tpu.memory_space<vmem>>, vector<1x128x256xbf16>
    %41 = vector.shape_cast %40 : vector<1x128x256xbf16> to vector<128x256xbf16>
    %cst_28 = arith.constant dense<0.000000e+00> : vector<4x256xf32>
    %42 = tpu.matmul %39, %41, %cst_28 {dimension_numbers = #tpu.dot_dimension_numbers<[1], [0], [0], [1], [0, 0, 1, 1], [], []>} : vector<4x128xbf16>, vector<128x256xbf16>, vector<4x256xf32> -> vector<4x256xf32>
    %43 = arith.addf %38, %42 : vector<4x256xf32>
    %44 = vector.extract_strided_slice %37 {offsets = [1, 0], sizes = [4, 128], strides = [1, 1]} : vector<6x128xbf16> to vector<4x128xbf16>
    %c1_29 = arith.constant 1 : index
    %c0_30 = arith.constant 0 : index
    %c0_31 = arith.constant 0 : index
    %45 = vector.load %arg5[%c1_29, %c0_30, %c0_31] : memref<3x128x256xbf16, #tpu.memory_space<vmem>>, vector<1x128x256xbf16>
    %46 = vector.shape_cast %45 : vector<1x128x256xbf16> to vector<128x256xbf16>
    %cst_32 = arith.constant dense<0.000000e+00> : vector<4x256xf32>
    %47 = tpu.matmul %44, %46, %cst_32 {dimension_numbers = #tpu.dot_dimension_numbers<[1], [0], [0], [1], [0, 0, 1, 1], [], []>} : vector<4x128xbf16>, vector<128x256xbf16>, vector<4x256xf32> -> vector<4x256xf32>
    %48 = arith.addf %43, %47 : vector<4x256xf32>
    %49 = vector.extract_strided_slice %37 {offsets = [2, 0], sizes = [4, 128], strides = [1, 1]} : vector<6x128xbf16> to vector<4x128xbf16>
    %c2_33 = arith.constant 2 : index
    %c0_34 = arith.constant 0 : index
    %c0_35 = arith.constant 0 : index
    %50 = vector.load %arg5[%c2_33, %c0_34, %c0_35] : memref<3x128x256xbf16, #tpu.memory_space<vmem>>, vector<1x128x256xbf16>
    %51 = vector.shape_cast %50 : vector<1x128x256xbf16> to vector<128x256xbf16>
    %cst_36 = arith.constant dense<0.000000e+00> : vector<4x256xf32>
    %52 = tpu.matmul %49, %51, %cst_36 {dimension_numbers = #tpu.dot_dimension_numbers<[1], [0], [0], [1], [0, 0, 1, 1], [], []>} : vector<4x128xbf16>, vector<128x256xbf16>, vector<4x256xf32> -> vector<4x256xf32>
    %53 = arith.addf %48, %52 : vector<4x256xf32>
    %c0_37 = arith.constant 0 : index
    %c0_38 = arith.constant 0 : index
    %54 = vector.load %arg6[%c0_37, %c0_38] : memref<1x128xf32, #tpu.memory_space<vmem>>, vector<1x128xf32>
    %c0_39 = arith.constant 0 : index
    %c0_40 = arith.constant 0 : index
    %55 = vector.load %arg7[%c0_39, %c0_40] : memref<1x128xf32, #tpu.memory_space<vmem>>, vector<1x128xf32>
    %56 = vector.extract_strided_slice %53 {offsets = [0, 0], sizes = [4, 128], strides = [1, 1]} : vector<4x256xf32> to vector<4x128xf32>
    %57 = vector.broadcast %54 : vector<1x128xf32> to vector<4x128xf32>
    %58 = arith.mulf %56, %57 : vector<4x128xf32>
    %59 = vector.broadcast %55 : vector<1x128xf32> to vector<4x128xf32>
    %60 = arith.addf %58, %59 : vector<4x128xf32>
    %61 = vector.extract_strided_slice %53 {offsets = [0, 128], sizes = [4, 128], strides = [1, 1]} : vector<4x256xf32> to vector<4x128xf32>
    %62 = vector.broadcast %54 : vector<1x128xf32> to vector<4x128xf32>
    %63 = arith.mulf %61, %62 : vector<4x128xf32>
    %64 = vector.broadcast %55 : vector<1x128xf32> to vector<4x128xf32>
    %65 = arith.addf %63, %64 : vector<4x128xf32>
    %66 = arith.maximumf %60, %65 : vector<4x128xf32>
    %cst_41 = arith.constant 0.000000e+00 : f32
    %67 = vector.broadcast %cst_41 : f32 to vector<4x128xf32>
    %68 = arith.maximumf %66, %67 : vector<4x128xf32>
    %cst_42 = arith.constant 0.000000e+00 : bf16
    %69 = vector.broadcast %cst_42 : bf16 to vector<6x128xbf16>
    %c0_43 = arith.constant 0 : index
    %c0_44 = arith.constant 0 : index
    %70 = vector.load %arg18[%c0_43, %c0_44] : memref<6x128xbf16, #tpu.memory_space<vmem>>, vector<6x128xbf16>
    tpu.vector_store %arg18[%c0_43, %c0_44], %69 {strides = array<i32>} : memref<6x128xbf16, #tpu.memory_space<vmem>>, vector<6x128xbf16>,
    %71 = arith.truncf %68 : vector<4x128xf32> to vector<4x128xbf16>
    %c1_45 = arith.constant 1 : index
    %c0_46 = arith.constant 0 : index
    %72 = vector.load %arg18[%c1_45, %c0_46] : memref<6x128xbf16, #tpu.memory_space<vmem>>, vector<4x128xbf16>
    tpu.vector_store %arg18[%c1_45, %c0_46], %71 {strides = array<i32>} : memref<6x128xbf16, #tpu.memory_space<vmem>>, vector<4x128xbf16>,
    %c0_47 = arith.constant 0 : index
    %c0_48 = arith.constant 0 : index
    %73 = vector.load %arg18[%c0_47, %c0_48] : memref<6x128xbf16, #tpu.memory_space<vmem>>, vector<6x128xbf16>
    %cst_49 = arith.constant 0.000000e+00 : f32
    %74 = vector.broadcast %cst_49 : f32 to vector<4x256xf32>
    %75 = vector.extract_strided_slice %73 {offsets = [0, 0], sizes = [4, 128], strides = [1, 1]} : vector<6x128xbf16> to vector<4x128xbf16>
    %c0_50 = arith.constant 0 : index
    %c0_51 = arith.constant 0 : index
    %c0_52 = arith.constant 0 : index
    %76 = vector.load %arg8[%c0_50, %c0_51, %c0_52] : memref<3x128x256xbf16, #tpu.memory_space<vmem>>, vector<1x128x256xbf16>
    %77 = vector.shape_cast %76 : vector<1x128x256xbf16> to vector<128x256xbf16>
    %cst_53 = arith.constant dense<0.000000e+00> : vector<4x256xf32>
    %78 = tpu.matmul %75, %77, %cst_53 {dimension_numbers = #tpu.dot_dimension_numbers<[1], [0], [0], [1], [0, 0, 1, 1], [], []>} : vector<4x128xbf16>, vector<128x256xbf16>, vector<4x256xf32> -> vector<4x256xf32>
    %79 = arith.addf %74, %78 : vector<4x256xf32>
    %80 = vector.extract_strided_slice %73 {offsets = [1, 0], sizes = [4, 128], strides = [1, 1]} : vector<6x128xbf16> to vector<4x128xbf16>
    %c1_54 = arith.constant 1 : index
    %c0_55 = arith.constant 0 : index
    %c0_56 = arith.constant 0 : index
    %81 = vector.load %arg8[%c1_54, %c0_55, %c0_56] : memref<3x128x256xbf16, #tpu.memory_space<vmem>>, vector<1x128x256xbf16>
    %82 = vector.shape_cast %81 : vector<1x128x256xbf16> to vector<128x256xbf16>
    %cst_57 = arith.constant dense<0.000000e+00> : vector<4x256xf32>
    %83 = tpu.matmul %80, %82, %cst_57 {dimension_numbers = #tpu.dot_dimension_numbers<[1], [0], [0], [1], [0, 0, 1, 1], [], []>} : vector<4x128xbf16>, vector<128x256xbf16>, vector<4x256xf32> -> vector<4x256xf32>
    %84 = arith.addf %79, %83 : vector<4x256xf32>
    %85 = vector.extract_strided_slice %73 {offsets = [2, 0], sizes = [4, 128], strides = [1, 1]} : vector<6x128xbf16> to vector<4x128xbf16>
    %c2_58 = arith.constant 2 : index
    %c0_59 = arith.constant 0 : index
    %c0_60 = arith.constant 0 : index
    %86 = vector.load %arg8[%c2_58, %c0_59, %c0_60] : memref<3x128x256xbf16, #tpu.memory_space<vmem>>, vector<1x128x256xbf16>
    %87 = vector.shape_cast %86 : vector<1x128x256xbf16> to vector<128x256xbf16>
    %cst_61 = arith.constant dense<0.000000e+00> : vector<4x256xf32>
    %88 = tpu.matmul %85, %87, %cst_61 {dimension_numbers = #tpu.dot_dimension_numbers<[1], [0], [0], [1], [0, 0, 1, 1], [], []>} : vector<4x128xbf16>, vector<128x256xbf16>, vector<4x256xf32> -> vector<4x256xf32>
    %89 = arith.addf %84, %88 : vector<4x256xf32>
    %c0_62 = arith.constant 0 : index
    %c0_63 = arith.constant 0 : index
    %90 = vector.load %arg9[%c0_62, %c0_63] : memref<1x128xf32, #tpu.memory_space<vmem>>, vector<1x128xf32>
    %c0_64 = arith.constant 0 : index
    %c0_65 = arith.constant 0 : index
    %91 = vector.load %arg10[%c0_64, %c0_65] : memref<1x128xf32, #tpu.memory_space<vmem>>, vector<1x128xf32>
    %92 = vector.extract_strided_slice %89 {offsets = [0, 0], sizes = [4, 128], strides = [1, 1]} : vector<4x256xf32> to vector<4x128xf32>
    %93 = vector.broadcast %90 : vector<1x128xf32> to vector<4x128xf32>
    %94 = arith.mulf %92, %93 : vector<4x128xf32>
    %95 = vector.broadcast %91 : vector<1x128xf32> to vector<4x128xf32>
    %96 = arith.addf %94, %95 : vector<4x128xf32>
    %97 = vector.extract_strided_slice %89 {offsets = [0, 128], sizes = [4, 128], strides = [1, 1]} : vector<4x256xf32> to vector<4x128xf32>
    %98 = vector.broadcast %90 : vector<1x128xf32> to vector<4x128xf32>
    %99 = arith.mulf %97, %98 : vector<4x128xf32>
    %100 = vector.broadcast %91 : vector<1x128xf32> to vector<4x128xf32>
    %101 = arith.addf %99, %100 : vector<4x128xf32>
    %102 = arith.maximumf %96, %101 : vector<4x128xf32>
    %cst_66 = arith.constant 0.000000e+00 : f32
    %103 = vector.broadcast %cst_66 : f32 to vector<4x128xf32>
    %104 = arith.maximumf %102, %103 : vector<4x128xf32>
    %cst_67 = arith.constant 0.000000e+00 : bf16
    %105 = vector.broadcast %cst_67 : bf16 to vector<6x128xbf16>
    %c0_68 = arith.constant 0 : index
    %c0_69 = arith.constant 0 : index
    %106 = vector.load %arg19[%c0_68, %c0_69] : memref<6x128xbf16, #tpu.memory_space<vmem>>, vector<6x128xbf16>
    tpu.vector_store %arg19[%c0_68, %c0_69], %105 {strides = array<i32>} : memref<6x128xbf16, #tpu.memory_space<vmem>>, vector<6x128xbf16>,
    %107 = arith.truncf %104 : vector<4x128xf32> to vector<4x128xbf16>
    %c1_70 = arith.constant 1 : index
    %c0_71 = arith.constant 0 : index
    %108 = vector.load %arg19[%c1_70, %c0_71] : memref<6x128xbf16, #tpu.memory_space<vmem>>, vector<4x128xbf16>
    tpu.vector_store %arg19[%c1_70, %c0_71], %107 {strides = array<i32>} : memref<6x128xbf16, #tpu.memory_space<vmem>>, vector<4x128xbf16>,
    %c0_72 = arith.constant 0 : index
    %c0_73 = arith.constant 0 : index
    %109 = vector.load %arg19[%c0_72, %c0_73] : memref<6x128xbf16, #tpu.memory_space<vmem>>, vector<6x128xbf16>
    %cst_74 = arith.constant 0.000000e+00 : f32
    %110 = vector.broadcast %cst_74 : f32 to vector<4x256xf32>
    %111 = vector.extract_strided_slice %109 {offsets = [0, 0], sizes = [4, 128], strides = [1, 1]} : vector<6x128xbf16> to vector<4x128xbf16>
    %c0_75 = arith.constant 0 : index
    %c0_76 = arith.constant 0 : index
    %c0_77 = arith.constant 0 : index
    %112 = vector.load %arg11[%c0_75, %c0_76, %c0_77] : memref<3x128x256xbf16, #tpu.memory_space<vmem>>, vector<1x128x256xbf16>
    %113 = vector.shape_cast %112 : vector<1x128x256xbf16> to vector<128x256xbf16>
    %cst_78 = arith.constant dense<0.000000e+00> : vector<4x256xf32>
    %114 = tpu.matmul %111, %113, %cst_78 {dimension_numbers = #tpu.dot_dimension_numbers<[1], [0], [0], [1], [0, 0, 1, 1], [], []>} : vector<4x128xbf16>, vector<128x256xbf16>, vector<4x256xf32> -> vector<4x256xf32>
    %115 = arith.addf %110, %114 : vector<4x256xf32>
    %116 = vector.extract_strided_slice %109 {offsets = [1, 0], sizes = [4, 128], strides = [1, 1]} : vector<6x128xbf16> to vector<4x128xbf16>
    %c1_79 = arith.constant 1 : index
    %c0_80 = arith.constant 0 : index
    %c0_81 = arith.constant 0 : index
    %117 = vector.load %arg11[%c1_79, %c0_80, %c0_81] : memref<3x128x256xbf16, #tpu.memory_space<vmem>>, vector<1x128x256xbf16>
    %118 = vector.shape_cast %117 : vector<1x128x256xbf16> to vector<128x256xbf16>
    %cst_82 = arith.constant dense<0.000000e+00> : vector<4x256xf32>
    %119 = tpu.matmul %116, %118, %cst_82 {dimension_numbers = #tpu.dot_dimension_numbers<[1], [0], [0], [1], [0, 0, 1, 1], [], []>} : vector<4x128xbf16>, vector<128x256xbf16>, vector<4x256xf32> -> vector<4x256xf32>
    %120 = arith.addf %115, %119 : vector<4x256xf32>
    %121 = vector.extract_strided_slice %109 {offsets = [2, 0], sizes = [4, 128], strides = [1, 1]} : vector<6x128xbf16> to vector<4x128xbf16>
    %c2_83 = arith.constant 2 : index
    %c0_84 = arith.constant 0 : index
    %c0_85 = arith.constant 0 : index
    %122 = vector.load %arg11[%c2_83, %c0_84, %c0_85] : memref<3x128x256xbf16, #tpu.memory_space<vmem>>, vector<1x128x256xbf16>
    %123 = vector.shape_cast %122 : vector<1x128x256xbf16> to vector<128x256xbf16>
    %cst_86 = arith.constant dense<0.000000e+00> : vector<4x256xf32>
    %124 = tpu.matmul %121, %123, %cst_86 {dimension_numbers = #tpu.dot_dimension_numbers<[1], [0], [0], [1], [0, 0, 1, 1], [], []>} : vector<4x128xbf16>, vector<128x256xbf16>, vector<4x256xf32> -> vector<4x256xf32>
    %125 = arith.addf %120, %124 : vector<4x256xf32>
    %c0_87 = arith.constant 0 : index
    %c0_88 = arith.constant 0 : index
    %126 = vector.load %arg12[%c0_87, %c0_88] : memref<1x128xf32, #tpu.memory_space<vmem>>, vector<1x128xf32>
    %c0_89 = arith.constant 0 : index
    %c0_90 = arith.constant 0 : index
    %127 = vector.load %arg13[%c0_89, %c0_90] : memref<1x128xf32, #tpu.memory_space<vmem>>, vector<1x128xf32>
    %128 = vector.extract_strided_slice %125 {offsets = [0, 0], sizes = [4, 128], strides = [1, 1]} : vector<4x256xf32> to vector<4x128xf32>
    %129 = vector.broadcast %126 : vector<1x128xf32> to vector<4x128xf32>
    %130 = arith.mulf %128, %129 : vector<4x128xf32>
    %131 = vector.broadcast %127 : vector<1x128xf32> to vector<4x128xf32>
    %132 = arith.addf %130, %131 : vector<4x128xf32>
    %133 = vector.extract_strided_slice %125 {offsets = [0, 128], sizes = [4, 128], strides = [1, 1]} : vector<4x256xf32> to vector<4x128xf32>
    %134 = vector.broadcast %126 : vector<1x128xf32> to vector<4x128xf32>
    %135 = arith.mulf %133, %134 : vector<4x128xf32>
    %136 = vector.broadcast %127 : vector<1x128xf32> to vector<4x128xf32>
    %137 = arith.addf %135, %136 : vector<4x128xf32>
    %138 = arith.maximumf %132, %137 : vector<4x128xf32>
    %cst_91 = arith.constant 0.000000e+00 : f32
    %139 = vector.broadcast %cst_91 : f32 to vector<4x128xf32>
    %140 = arith.maximumf %138, %139 : vector<4x128xf32>
    %c0_92 = arith.constant 0 : index
    %c0_93 = arith.constant 0 : index
    %141 = vector.load %arg14[%c0_92, %c0_93] : memref<4x128xf32, #tpu.memory_space<vmem>>, vector<4x128xf32>
    %142 = arith.mulf %140, %141 : vector<4x128xf32>
    %c0_94 = arith.constant 0 : index
    %c0_95 = arith.constant 0 : index
    %143 = vector.load %arg15[%c0_94, %c0_95] : memref<4x128xf32, #tpu.memory_space<vmem>>, vector<4x128xf32>
    %144 = arith.addf %142, %143 : vector<4x128xf32>
    %c0_96 = arith.constant 0 : index
    %c0_97 = arith.constant 0 : index
    %c0_98 = arith.constant 0 : index
    %145 = vector.load %arg16[%c0_96, %c0_97, %c0_98] : memref<1x4x128xf32, #tpu.memory_space<vmem>>, vector<1x4x128xf32>
    %146 = vector.shape_cast %145 : vector<1x4x128xf32> to vector<4x128xf32>
    %147 = vector.shape_cast %144 : vector<4x128xf32> to vector<1x4x128xf32>
    tpu.vector_store %arg16[%c0_96, %c0_97, %c0_98], %147 {strides = array<i32>} : memref<1x4x128xf32, #tpu.memory_space<vmem>>, vector<1x4x128xf32>,
    return
  }
  func.func @transform_0(%arg0: i32) -> (i32, i32, i32) {
    %c0_i32 = arith.constant 0 : i32
    %c0_i32_0 = arith.constant 0 : i32
    %c0_i32_1 = arith.constant 0 : i32
    return %arg0, %c0_i32, %c0_i32_0 : i32, i32, i32
  }
  func.func @transform_1(%arg0: i32) -> (i32, i32, i32) {
    %c0_i32 = arith.constant 0 : i32
    %c0_i32_0 = arith.constant 0 : i32
    %c0_i32_1 = arith.constant 0 : i32
    %c0_i32_2 = arith.constant 0 : i32
    return %c0_i32, %c0_i32_0, %c0_i32_1 : i32, i32, i32
  }
  func.func @transform_2(%arg0: i32) -> (i32, i32) {
    %c0_i32 = arith.constant 0 : i32
    %c0_i32_0 = arith.constant 0 : i32
    %c0_i32_1 = arith.constant 0 : i32
    return %c0_i32, %c0_i32_0 : i32, i32
  }
  func.func @transform_3(%arg0: i32) -> (i32, i32) {
    %c0_i32 = arith.constant 0 : i32
    %c0_i32_0 = arith.constant 0 : i32
    %c0_i32_1 = arith.constant 0 : i32
    return %c0_i32, %c0_i32_0 : i32, i32
  }
  func.func @transform_4(%arg0: i32) -> (i32, i32, i32) {
    %c0_i32 = arith.constant 0 : i32
    %c0_i32_0 = arith.constant 0 : i32
    %c0_i32_1 = arith.constant 0 : i32
    %c0_i32_2 = arith.constant 0 : i32
    return %c0_i32, %c0_i32_0, %c0_i32_1 : i32, i32, i32
  }
  func.func @transform_5(%arg0: i32) -> (i32, i32) {
    %c0_i32 = arith.constant 0 : i32
    %c0_i32_0 = arith.constant 0 : i32
    %c0_i32_1 = arith.constant 0 : i32
    return %c0_i32, %c0_i32_0 : i32, i32
  }
  func.func @transform_6(%arg0: i32) -> (i32, i32) {
    %c0_i32 = arith.constant 0 : i32
    %c0_i32_0 = arith.constant 0 : i32
    %c0_i32_1 = arith.constant 0 : i32
    return %c0_i32, %c0_i32_0 : i32, i32
  }
  func.func @transform_7(%arg0: i32) -> (i32, i32, i32) {
    %c0_i32 = arith.constant 0 : i32
    %c0_i32_0 = arith.constant 0 : i32
    %c0_i32_1 = arith.constant 0 : i32
    %c0_i32_2 = arith.constant 0 : i32
    return %c0_i32, %c0_i32_0, %c0_i32_1 : i32, i32, i32
  }
  func.func @transform_8(%arg0: i32) -> (i32, i32) {
    %c0_i32 = arith.constant 0 : i32
    %c0_i32_0 = arith.constant 0 : i32
    %c0_i32_1 = arith.constant 0 : i32
    return %c0_i32, %c0_i32_0 : i32, i32
  }
  func.func @transform_9(%arg0: i32) -> (i32, i32) {
    %c0_i32 = arith.constant 0 : i32
    %c0_i32_0 = arith.constant 0 : i32
    %c0_i32_1 = arith.constant 0 : i32
    return %c0_i32, %c0_i32_0 : i32, i32
  }
  func.func @transform_10(%arg0: i32) -> (i32, i32, i32) {
    %c0_i32 = arith.constant 0 : i32
    %c0_i32_0 = arith.constant 0 : i32
    %c0_i32_1 = arith.constant 0 : i32
    %c0_i32_2 = arith.constant 0 : i32
    return %c0_i32, %c0_i32_0, %c0_i32_1 : i32, i32, i32
  }
  func.func @transform_11(%arg0: i32) -> (i32, i32) {
    %c0_i32 = arith.constant 0 : i32
    %c0_i32_0 = arith.constant 0 : i32
    %c0_i32_1 = arith.constant 0 : i32
    return %c0_i32, %c0_i32_0 : i32, i32
  }
  func.func @transform_12(%arg0: i32) -> (i32, i32) {
    %c0_i32 = arith.constant 0 : i32
    %c0_i32_0 = arith.constant 0 : i32
    %c0_i32_1 = arith.constant 0 : i32
    return %c0_i32, %c0_i32_0 : i32, i32
  }
  func.func @transform_13(%arg0: i32) -> (i32, i32) {
    %c0_i32 = arith.constant 0 : i32
    %c0_i32_0 = arith.constant 0 : i32
    %c0_i32_1 = arith.constant 0 : i32
    return %c0_i32, %c0_i32_0 : i32, i32
  }
  func.func @transform_14(%arg0: i32) -> (i32, i32) {
    %c0_i32 = arith.constant 0 : i32
    %c0_i32_0 = arith.constant 0 : i32
    %c0_i32_1 = arith.constant 0 : i32
    return %c0_i32, %c0_i32_0 : i32, i32
  }
  func.func @transform_15(%arg0: i32) -> (i32, i32, i32) {
    %c0_i32 = arith.constant 0 : i32
    %c0_i32_0 = arith.constant 0 : i32
    %c0_i32_1 = arith.constant 0 : i32
    return %arg0, %c0_i32, %c0_i32_0 : i32, i32, i32
  }
}

</mosaic_0001>

<llo_original>
// kernel: tpu_custom_call.1
$region0: #{tpu_custom_call.1}
  #allocation0 [shape = 'u32[]', space=smem, size = 0x4, offset = 0x4, fixed_abs, tag = 'smem constant byte address 0x4 - core index']
  #allocation1 [shape = 'u32[144,128]{1,0:T(1,128)}', space=vmem, size = 0x12000, scoped, tag = 'internal scratch']
  #allocation2 [shape = 'bf16[6,128]{1,0:T(8,128)(2,1)}', space=vmem, size = 0x800, scoped, tag = 'scratch operand']
  #allocation3 [shape = 'bf16[6,128]{1,0:T(8,128)(2,1)}', space=vmem, size = 0x800, scoped, tag = 'scratch operand']
  #allocation4 [shape = 'bf16[6,128]{1,0:T(8,128)(2,1)}', space=vmem, size = 0x800, scoped, tag = 'scratch operand']
  %s0 = inlined_call_operand.vmem [shape: bf16[2,6,64], index: 0, kind: input, shape index: {}]
  %s1 = inlined_call_operand.hbm [shape: bf16[3,64,256], index: 1, kind: input, shape index: {}]
  %s2 = inlined_call_operand.vmem [shape: f32[1,128], index: 2, kind: input, shape index: {}]
  %s3 = inlined_call_operand.vmem [shape: f32[1,128], index: 3, kind: input, shape index: {}]
  %s4 = inlined_call_operand.hbm [shape: bf16[3,128,256], index: 4, kind: input, shape index: {}]
  %s5 = inlined_call_operand.vmem [shape: f32[1,128], index: 5, kind: input, shape index: {}]
  %s6 = inlined_call_operand.vmem [shape: f32[1,128], index: 6, kind: input, shape index: {}]
  %s7 = inlined_call_operand.hbm [shape: bf16[3,128,256], index: 7, kind: input, shape index: {}]
  %s8 = inlined_call_operand.vmem [shape: f32[1,128], index: 8, kind: input, shape index: {}]
  %s9 = inlined_call_operand.vmem [shape: f32[1,128], index: 9, kind: input, shape index: {}]
  %s10 = inlined_call_operand.hbm [shape: bf16[3,128,256], index: 10, kind: input, shape index: {}]
  %s11 = inlined_call_operand.vmem [shape: f32[1,128], index: 11, kind: input, shape index: {}]
  %s12 = inlined_call_operand.vmem [shape: f32[1,128], index: 12, kind: input, shape index: {}]
  %s13 = inlined_call_operand.vmem [shape: f32[4,128], index: 13, kind: input, shape index: {}]
  %s14 = inlined_call_operand.vmem [shape: f32[4,128], index: 14, kind: input, shape index: {}]
  %s15 = inlined_call_operand.hbm [shape: f32[2,4,128], index: 15, kind: output, shape index: {}]
  %s16 = sld [smem:[#allocation0]]
  $region109: #{tpu_custom_call.1} parent=0
    _
  %s18 = ssub.s32 1, %s16
  %s19 = scalar_select 0, %s18, %s16
  $region1: #{tpu_custom_call.1} parent=0
    #allocation5 [shape = 'u8[98304]{0}', space=vmem, size = 0x18000, scoped, tag = 'input window, operand 1, single buffered']
    #allocation6 [shape = 's32[2]{0}', space=sflag, size = 0x8, scoped, tag = 'scoped memory for tpu_custom_call.1']
    #allocation7 [shape = 's32[2]{0}', space=sflag, size = 0x8, scoped, tag = 'scoped memory for tpu_custom_call.1']
    #allocation8 [shape = 'u8[196608]{0}', space=vmem, size = 0x30000, scoped, tag = 'input window, operand 4, single buffered']
    #allocation9 [shape = 's32[1]{0}', space=sflag, size = 0x4, scoped, tag = 'scoped memory for tpu_custom_call.1']
    #allocation10 [shape = 'u8[196608]{0}', space=vmem, size = 0x30000, scoped, tag = 'input window, operand 7, single buffered']
    #allocation11 [shape = 'u8[196608]{0}', space=vmem, size = 0x30000, scoped, tag = 'input window, operand 10, single buffered']
    #allocation12 [shape = 's32[1]{0}', space=sflag, size = 0x4, scoped, tag = 'scoped memory for tpu_custom_call.1']
    #allocation13 [shape = 'u8[4096]{0}', space=vmem, size = 0x1000, scoped, tag = 'output window, operand 0']
    %20 = vsyncpa [#allocation6], 0
    %21 = vsyncpa [#allocation9], 0
    %22 = vsyncpa [#allocation12], 0
    %23 = vsyncpa [#allocation7], 0
    %s24 = scalar_lea.sflag [#allocation7], 1
    %25 = vsyncpa %s24, 0
    loop: start=0, step=1, limit=4
    $region2: #{tpu_custom_call.1} parent=1 // loop_pre_header
      _
    $region3: #{tpu_custom_call.1} parent=1 // loop_header
      %s27 = sphi 0, %s31
      %p28 = scmp.ge.s32.totalorder %s27, 4
      %s37 = sphi 0, %s39
      %s40 = sphi 0, %s37
      %s41 = sphi 0, %s40
      %s57 = sphi 0, %s41
      %s61 = sphi 0, %s61
      %s63 = sphi 0, %s61
      %s64 = sphi 0, %s63
      %s78 = sphi 0, %s64
      %s82 = sphi 0, %s82
      %s84 = sphi 0, %s82
      %s85 = sphi 0, %s84
      %s99 = sphi 0, %s85
      %s103 = sphi 0, %s103
      %s105 = sphi 0, %s103
      %s106 = sphi 0, %s105
      %s120 = sphi 0, %s106
      %s124 = sphi 0, %s124
      %s126 = sphi 0, %s124
      %s127 = sphi 0, %s126
      %s141 = sphi 0, %s127
      %s145 = sphi 0, %s145
      %s147 = sphi 0, %s145
      %s148 = sphi 0, %s147
      %s162 = sphi 0, %s148
      %s166 = sphi 0, %s166
      %s168 = sphi 0, %s166
      %s169 = sphi 0, %s168
      %s183 = sphi 0, %s169
      %s187 = sphi 0, %s187
      %s189 = sphi 0, %s187
      %s190 = sphi 0, %s189
      %s204 = sphi 0, %s190
      %s208 = sphi 0, %s208
      %s210 = sphi 0, %s208
      %s211 = sphi 0, %s210
      %s225 = sphi 0, %s211
      %s229 = sphi 0, %s229
      %s231 = sphi 0, %s229
      %s232 = sphi 0, %s231
      %s246 = sphi 0, %s232
      %s250 = sphi 0, %s250
      %s252 = sphi 0, %s250
      %s253 = sphi 0, %s252
      %s267 = sphi 0, %s253
      %s271 = sphi 0, %s271
      %s273 = sphi 0, %s271
      %s274 = sphi 0, %s273
      %s288 = sphi 0, %s274
      %s292 = sphi 0, %s292
      %s294 = sphi 0, %s292
      %s295 = sphi 0, %s294
      %s309 = sphi 0, %s295
      %s313 = sphi 0, %s313
      %s315 = sphi 0, %s313
      %s316 = sphi 0, %s315
      %s330 = sphi 0, %s316
      %s334 = sphi 0, %s334
      %s336 = sphi 0, %s334
      %s337 = sphi 0, %s336
      %s351 = sphi 0, %s337
      %s357 = sphi 0, %s359
      %s360 = sphi 0, %s357
      %s361 = sphi 0, %s360
      %s377 = sphi 0, %s361
    $region4: #{tpu_custom_call.1} parent=1 // loop_header_branch
      %30 = sbr.rel (%p28) target = $region8
    $region5: #{tpu_custom_call.1} parent=1 // loop_body
      %s32 = ssub.s32 %s27, 1
      %s33 = ssub.s32 %s27, 2
      %s34 = sadd.s32 %s27, 1
      %s35 = ssub.s32 %s27, %s34
      %p36 = scmp.eq.s32.totalorder %s35, 0
      %s38 = sadd.s32 %s37, 1
      %s39 = scalar_select %p36, %s37, %s38
      %p42 = pneg %p36
      %p43 = scmp.eq.s32.totalorder %s27, 1
      %p44 = por %p42, %p43
      %p45 = scmp.ne.s32.totalorder %s37, %s40
      %p46 = scmp.eq.s32.totalorder %s27, 0
      %p47 = por %p45, %p46
      %p48 = scmp.ne.s32.totalorder %s37, %s40
      %p49 = scmp.eq.s32.totalorder %s32, 1
      %p50 = por %p48, %p49
      %p51 = scmp.ne.s32.totalorder %s40, %s41
      %p52 = scmp.eq.s32.totalorder %s32, 0
      %p53 = por %p51, %p52
      %p54 = scmp.ne.s32.totalorder %s40, %s41
      %p55 = scmp.eq.s32.totalorder %s33, 1
      %p56 = por %p54, %p55
      %p58 = scmp.ne.s32.totalorder %s41, %s57
      %p59 = scmp.eq.s32.totalorder %s33, 0
      %p60 = por %p58, %p59
      %s62 = sadd.s32 %s61, 1
      %p65 = scmp.eq.s32.totalorder %s27, 1
      %p66 = scmp.ne.s32.totalorder %s61, %s63
      %p67 = scmp.eq.s32.totalorder %s27, 0
      %p68 = por %p66, %p67
      %p69 = scmp.ne.s32.totalorder %s61, %s63
      %p70 = scmp.eq.s32.totalorder %s32, 1
      %p71 = por %p69, %p70
      %p72 = scmp.ne.s32.totalorder %s63, %s64
      %p73 = scmp.eq.s32.totalorder %s32, 0
      %p74 = por %p72, %p73
      %p75 = scmp.ne.s32.totalorder %s63, %s64
      %p76 = scmp.eq.s32.totalorder %s33, 1
      %p77 = por %p75, %p76
      %p79 = scmp.ne.s32.totalorder %s64, %s78
      %p80 = scmp.eq.s32.totalorder %s33, 0
      %p81 = por %p79, %p80
      %s83 = sadd.s32 %s82, 1
      %p86 = scmp.eq.s32.totalorder %s27, 1
      %p87 = scmp.ne.s32.totalorder %s82, %s84
      %p88 = scmp.eq.s32.totalorder %s27, 0
      %p89 = por %p87, %p88
      %p90 = scmp.ne.s32.totalorder %s82, %s84
      %p91 = scmp.eq.s32.totalorder %s32, 1
      %p92 = por %p90, %p91
      %p93 = scmp.ne.s32.totalorder %s84, %s85
      %p94 = scmp.eq.s32.totalorder %s32, 0
      %p95 = por %p93, %p94
      %p96 = scmp.ne.s32.totalorder %s84, %s85
      %p97 = scmp.eq.s32.totalorder %s33, 1
      %p98 = por %p96, %p97
      %p100 = scmp.ne.s32.totalorder %s85, %s99
      %p101 = scmp.eq.s32.totalorder %s33, 0
      %p102 = por %p100, %p101
      %s104 = sadd.s32 %s103, 1
      %p107 = scmp.eq.s32.totalorder %s27, 1
      %p108 = scmp.ne.s32.totalorder %s103, %s105
      %p109 = scmp.eq.s32.totalorder %s27, 0
      %p110 = por %p108, %p109
      %p111 = scmp.ne.s32.totalorder %s103, %s105
      %p112 = scmp.eq.s32.totalorder %s32, 1
      %p113 = por %p111, %p112
      %p114 = scmp.ne.s32.totalorder %s105, %s106
      %p115 = scmp.eq.s32.totalorder %s32, 0
      %p116 = por %p114, %p115
      %p117 = scmp.ne.s32.totalorder %s105, %s106
      %p118 = scmp.eq.s32.totalorder %s33, 1
      %p119 = por %p117, %p118
      %p121 = scmp.ne.s32.totalorder %s106, %s120
      %p122 = scmp.eq.s32.totalorder %s33, 0
      %p123 = por %p121, %p122
      %s125 = sadd.s32 %s124, 1
      %p128 = scmp.eq.s32.totalorder %s27, 1
      %p129 = scmp.ne.s32.totalorder %s124, %s126
      %p130 = scmp.eq.s32.totalorder %s27, 0
      %p131 = por %p129, %p130
      %p132 = scmp.ne.s32.totalorder %s124, %s126
      %p133 = scmp.eq.s32.totalorder %s32, 1
      %p134 = por %p132, %p133
      %p135 = scmp.ne.s32.totalorder %s126, %s127
      %p136 = scmp.eq.s32.totalorder %s32, 0
      %p137 = por %p135, %p136
      %p138 = scmp.ne.s32.totalorder %s126, %s127
      %p139 = scmp.eq.s32.totalorder %s33, 1
      %p140 = por %p138, %p139
      %p142 = scmp.ne.s32.totalorder %s127, %s141
      %p143 = scmp.eq.s32.totalorder %s33, 0
      %p144 = por %p142, %p143
      %s146 = sadd.s32 %s145, 1
      %p149 = scmp.eq.s32.totalorder %s27, 1
      %p150 = scmp.ne.s32.totalorder %s145, %s147
      %p151 = scmp.eq.s32.totalorder %s27, 0
      %p152 = por %p150, %p151
      %p153 = scmp.ne.s32.totalorder %s145, %s147
      %p154 = scmp.eq.s32.totalorder %s32, 1
      %p155 = por %p153, %p154
      %p156 = scmp.ne.s32.totalorder %s147, %s148
      %p157 = scmp.eq.s32.totalorder %s32, 0
      %p158 = por %p156, %p157
      %p159 = scmp.ne.s32.totalorder %s147, %s148
      %p160 = scmp.eq.s32.totalorder %s33, 1
      %p161 = por %p159, %p160
      %p163 = scmp.ne.s32.totalorder %s148, %s162
      %p164 = scmp.eq.s32.totalorder %s33, 0
      %p165 = por %p163, %p164
      %s167 = sadd.s32 %s166, 1
      %p170 = scmp.eq.s32.totalorder %s27, 1
      %p171 = scmp.ne.s32.totalorder %s166, %s168
      %p172 = scmp.eq.s32.totalorder %s27, 0
      %p173 = por %p171, %p172
      %p174 = scmp.ne.s32.totalorder %s166, %s168
      %p175 = scmp.eq.s32.totalorder %s32, 1
      %p176 = por %p174, %p175
      %p177 = scmp.ne.s32.totalorder %s168, %s169
      %p178 = scmp.eq.s32.totalorder %s32, 0
      %p179 = por %p177, %p178
      %p180 = scmp.ne.s32.totalorder %s168, %s169
      %p181 = scmp.eq.s32.totalorder %s33, 1
      %p182 = por %p180, %p181
      %p184 = scmp.ne.s32.totalorder %s169, %s183
      %p185 = scmp.eq.s32.totalorder %s33, 0
      %p186 = por %p184, %p185
      %s188 = sadd.s32 %s187, 1
      %p191 = scmp.eq.s32.totalorder %s27, 1
      %p192 = scmp.ne.s32.totalorder %s187, %s189
      %p193 = scmp.eq.s32.totalorder %s27, 0
      %p194 = por %p192, %p193
      %p195 = scmp.ne.s32.totalorder %s187, %s189
      %p196 = scmp.eq.s32.totalorder %s32, 1
      %p197 = por %p195, %p196
      %p198 = scmp.ne.s32.totalorder %s189, %s190
      %p199 = scmp.eq.s32.totalorder %s32, 0
      %p200 = por %p198, %p199
      %p201 = scmp.ne.s32.totalorder %s189, %s190
      %p202 = scmp.eq.s32.totalorder %s33, 1
      %p203 = por %p201, %p202
      %p205 = scmp.ne.s32.totalorder %s190, %s204
      %p206 = scmp.eq.s32.totalorder %s33, 0
      %p207 = por %p205, %p206
      %s209 = sadd.s32 %s208, 1
      %p212 = scmp.eq.s32.totalorder %s27, 1
      %p213 = scmp.ne.s32.totalorder %s208, %s210
      %p214 = scmp.eq.s32.totalorder %s27, 0
      %p215 = por %p213, %p214
      %p216 = scmp.ne.s32.totalorder %s208, %s210
      %p217 = scmp.eq.s32.totalorder %s32, 1
      %p218 = por %p216, %p217
      %p219 = scmp.ne.s32.totalorder %s210, %s211
      %p220 = scmp.eq.s32.totalorder %s32, 0
      %p221 = por %p219, %p220
      %p222 = scmp.ne.s32.totalorder %s210, %s211
      %p223 = scmp.eq.s32.totalorder %s33, 1
      %p224 = por %p222, %p223
      %p226 = scmp.ne.s32.totalorder %s211, %s225
      %p227 = scmp.eq.s32.totalorder %s33, 0
      %p228 = por %p226, %p227
      %s230 = sadd.s32 %s229, 1
      %p233 = scmp.eq.s32.totalorder %s27, 1
      %p234 = scmp.ne.s32.totalorder %s229, %s231
      %p235 = scmp.eq.s32.totalorder %s27, 0
      %p236 = por %p234, %p235
      %p237 = scmp.ne.s32.totalorder %s229, %s231
      %p238 = scmp.eq.s32.totalorder %s32, 1
      %p239 = por %p237, %p238
      %p240 = scmp.ne.s32.totalorder %s231, %s232
      %p241 = scmp.eq.s32.totalorder %s32, 0
      %p242 = por %p240, %p241
      %p243 = scmp.ne.s32.totalorder %s231, %s232
      %p244 = scmp.eq.s32.totalorder %s33, 1
      %p245 = por %p243, %p244
      %p247 = scmp.ne.s32.totalorder %s232, %s246
      %p248 = scmp.eq.s32.totalorder %s33, 0
      %p249 = por %p247, %p248
      %s251 = sadd.s32 %s250, 1
      %p254 = scmp.eq.s32.totalorder %s27, 1
      %p255 = scmp.ne.s32.totalorder %s250, %s252
      %p256 = scmp.eq.s32.totalorder %s27, 0
      %p257 = por %p255, %p256
      %p258 = scmp.ne.s32.totalorder %s250, %s252
      %p259 = scmp.eq.s32.totalorder %s32, 1
      %p260 = por %p258, %p259
      %p261 = scmp.ne.s32.totalorder %s252, %s253
      %p262 = scmp.eq.s32.totalorder %s32, 0
      %p263 = por %p261, %p262
      %p264 = scmp.ne.s32.totalorder %s252, %s253
      %p265 = scmp.eq.s32.totalorder %s33, 1
      %p266 = por %p264, %p265
      %p268 = scmp.ne.s32.totalorder %s253, %s267
      %p269 = scmp.eq.s32.totalorder %s33, 0
      %p270 = por %p268, %p269
      %s272 = sadd.s32 %s271, 1
      %p275 = scmp.eq.s32.totalorder %s27, 1
      %p276 = scmp.ne.s32.totalorder %s271, %s273
      %p277 = scmp.eq.s32.totalorder %s27, 0
      %p278 = por %p276, %p277
      %p279 = scmp.ne.s32.totalorder %s271, %s273
      %p280 = scmp.eq.s32.totalorder %s32, 1
      %p281 = por %p279, %p280
      %p282 = scmp.ne.s32.totalorder %s273, %s274
      %p283 = scmp.eq.s32.totalorder %s32, 0
      %p284 = por %p282, %p283
      %p285 = scmp.ne.s32.totalorder %s273, %s274
      %p286 = scmp.eq.s32.totalorder %s33, 1
      %p287 = por %p285, %p286
      %p289 = scmp.ne.s32.totalorder %s274, %s288
      %p290 = scmp.eq.s32.totalorder %s33, 0
      %p291 = por %p289, %p290
      %s293 = sadd.s32 %s292, 1
      %p296 = scmp.eq.s32.totalorder %s27, 1
      %p297 = scmp.ne.s32.totalorder %s292, %s294
      %p298 = scmp.eq.s32.totalorder %s27, 0
      %p299 = por %p297, %p298
      %p300 = scmp.ne.s32.totalorder %s292, %s294
      %p301 = scmp.eq.s32.totalorder %s32, 1
      %p302 = por %p300, %p301
      %p303 = scmp.ne.s32.totalorder %s294, %s295
      %p304 = scmp.eq.s32.totalorder %s32, 0
      %p305 = por %p303, %p304
      %p306 = scmp.ne.s32.totalorder %s294, %s295
      %p307 = scmp.eq.s32.totalorder %s33, 1
      %p308 = por %p306, %p307
      %p310 = scmp.ne.s32.totalorder %s295, %s309
      %p311 = scmp.eq.s32.totalorder %s33, 0
      %p312 = por %p310, %p311
      %s314 = sadd.s32 %s313, 1
      %p317 = scmp.eq.s32.totalorder %s27, 1
      %p318 = scmp.ne.s32.totalorder %s313, %s315
      %p319 = scmp.eq.s32.totalorder %s27, 0
      %p320 = por %p318, %p319
      %p321 = scmp.ne.s32.totalorder %s313, %s315
      %p322 = scmp.eq.s32.totalorder %s32, 1
      %p323 = por %p321, %p322
      %p324 = scmp.ne.s32.totalorder %s315, %s316
      %p325 = scmp.eq.s32.totalorder %s32, 0
      %p326 = por %p324, %p325
      %p327 = scmp.ne.s32.totalorder %s315, %s316
      %p328 = scmp.eq.s32.totalorder %s33, 1
      %p329 = por %p327, %p328
      %p331 = scmp.ne.s32.totalorder %s316, %s330
      %p332 = scmp.eq.s32.totalorder %s33, 0
      %p333 = por %p331, %p332
      %s335 = sadd.s32 %s334, 1
      %p338 = scmp.eq.s32.totalorder %s27, 1
      %p339 = scmp.ne.s32.totalorder %s334, %s336
      %p340 = scmp.eq.s32.totalorder %s27, 0
      %p341 = por %p339, %p340
      %p342 = scmp.ne.s32.totalorder %s334, %s336
      %p343 = scmp.eq.s32.totalorder %s32, 1
      %p344 = por %p342, %p343
      %p345 = scmp.ne.s32.totalorder %s336, %s337
      %p346 = scmp.eq.s32.totalorder %s32, 0
      %p347 = por %p345, %p346
      %p348 = scmp.ne.s32.totalorder %s336, %s337
      %p349 = scmp.eq.s32.totalorder %s33, 1
      %p350 = por %p348, %p349
      %p352 = scmp.ne.s32.totalorder %s337, %s351
      %p353 = scmp.eq.s32.totalorder %s33, 0
      %p354 = por %p352, %p353
      %s355 = ssub.s32 %s27, %s34
      %p356 = scmp.eq.s32.totalorder %s355, 0
      %s358 = sadd.s32 %s357, 1
      %s359 = scalar_select %p356, %s357, %s358
      %p362 = pneg %p356
      %p363 = scmp.eq.s32.totalorder %s27, 1
      %p364 = por %p362, %p363
      %p365 = scmp.ne.s32.totalorder %s357, %s360
      %p366 = scmp.eq.s32.totalorder %s27, 0
      %p367 = por %p365, %p366
      %p368 = scmp.ne.s32.totalorder %s357, %s360
      %p369 = scmp.eq.s32.totalorder %s32, 1
      %p370 = por %p368, %p369
      %p371 = scmp.ne.s32.totalorder %s360, %s361
      %p372 = scmp.eq.s32.totalorder %s32, 0
      %p373 = por %p371, %p372
      %p374 = scmp.ne.s32.totalorder %s360, %s361
      %p375 = scmp.eq.s32.totalorder %s33, 1
      %p376 = por %p374, %p375
      %p378 = scmp.ne.s32.totalorder %s361, %s377
      %p379 = scmp.eq.s32.totalorder %s33, 0
      %p380 = por %p378, %p379
      %p381 = scmp.le.s32.totalorder 1, %s27
      %p382 = scmp.lt.s32.totalorder %s27, 3
      %p383 = pnand %p381, %p382
      %p384 = pneg %p383
      // Predicated region
      $region9: #{tpu_custom_call.1} parent=5 // pred_check
        _
      $region10: #{tpu_custom_call.1} parent=5 // pred_check_branch
        %386 = sbr.rel (%p383) target = $region12
      $region11: #{tpu_custom_call.1} parent=5 // pred_region
        %s387 = ssub.s32 %s27, 1
        // Predicated region
        $region13: #{tpu_custom_call.1} parent=11 // pred_check
          %p388 = pneg %p74
        $region14: #{tpu_custom_call.1} parent=11 // pred_check_branch
          %390 = sbr.rel (%p388) target = $region16
        $region15: #{tpu_custom_call.1} parent=11 // pred_region
          %s392 = ssub.s32 3072, 3072
          %393 = vsyncadd [#allocation6], %s392
          %s394 = sshll.u32 [#allocation5], 4
          %s395 = int_to_ptr.vmem [resolvable:$true] %s394
          %400 = dma.hbm_to_vmem [thread:$0]  %s1, 3072, %s395, [#allocation6], 128, 128, 8
        $region16: #{tpu_custom_call.1} parent=11 // pred_fallthru
          _
        // Predicated region
        $region17: #{tpu_custom_call.1} parent=11 // pred_check
          %p401 = pneg %p95
        $region18: #{tpu_custom_call.1} parent=11 // pred_check_branch
          %403 = sbr.rel (%p401) target = $region20
        $region19: #{tpu_custom_call.1} parent=11 // pred_region
          _
        $region20: #{tpu_custom_call.1} parent=11 // pred_fallthru
          _
        // Predicated region
        $region21: #{tpu_custom_call.1} parent=11 // pred_check
          %p404 = pneg %p116
        $region22: #{tpu_custom_call.1} parent=11 // pred_check_branch
          %406 = sbr.rel (%p404) target = $region24
        $region23: #{tpu_custom_call.1} parent=11 // pred_region
          _
        $region24: #{tpu_custom_call.1} parent=11 // pred_fallthru
          _
        // Predicated region
        $region25: #{tpu_custom_call.1} parent=11 // pred_check
          %p407 = pneg %p137
        $region26: #{tpu_custom_call.1} parent=11 // pred_check_branch
          %409 = sbr.rel (%p407) target = $region28
        $region27: #{tpu_custom_call.1} parent=11 // pred_region
          %s411 = ssub.s32 6144, 6144
          %412 = vsyncadd [#allocation9], %s411
          %s413 = sshll.u32 [#allocation8], 4
          %s414 = int_to_ptr.vmem [resolvable:$true] %s413
          %419 = dma.hbm_to_vmem [thread:$0]  %s4, 6144, %s414, [#allocation9], 128, 128, 8
        $region28: #{tpu_custom_call.1} parent=11 // pred_fallthru
          _
        // Predicated region
        $region29: #{tpu_custom_call.1} parent=11 // pred_check
          %p420 = pneg %p158
        $region30: #{tpu_custom_call.1} parent=11 // pred_check_branch
          %422 = sbr.rel (%p420) target = $region32
        $region31: #{tpu_custom_call.1} parent=11 // pred_region
          _
        $region32: #{tpu_custom_call.1} parent=11 // pred_fallthru
          _
        // Predicated region
        $region33: #{tpu_custom_call.1} parent=11 // pred_check
          %p423 = pneg %p179
        $region34: #{tpu_custom_call.1} parent=11 // pred_check_branch
          %425 = sbr.rel (%p423) target = $region36
        $region35: #{tpu_custom_call.1} parent=11 // pred_region
          _
        $region36: #{tpu_custom_call.1} parent=11 // pred_fallthru
          _
        // Predicated region
        $region37: #{tpu_custom_call.1} parent=11 // pred_check
          %p426 = pneg %p200
        $region38: #{tpu_custom_call.1} parent=11 // pred_check_branch
          %428 = sbr.rel (%p426) target = $region40
        $region39: #{tpu_custom_call.1} parent=11 // pred_region
          %s430 = ssub.s32 6144, 6144
          %431 = vsyncadd [#allocation9], %s430
          %s432 = sshll.u32 [#allocation10], 4
          %s433 = int_to_ptr.vmem [resolvable:$true] %s432
          %438 = dma.hbm_to_vmem [thread:$0]  %s7, 6144, %s433, [#allocation9], 128, 128, 8
        $region40: #{tpu_custom_call.1} parent=11 // pred_fallthru
          _
        // Predicated region
        $region41: #{tpu_custom_call.1} parent=11 // pred_check
          %p439 = pneg %p221
        $region42: #{tpu_custom_call.1} parent=11 // pred_check_branch
          %441 = sbr.rel (%p439) target = $region44
        $region43: #{tpu_custom_call.1} parent=11 // pred_region
          _
        $region44: #{tpu_custom_call.1} parent=11 // pred_fallthru
          _
        // Predicated region
        $region45: #{tpu_custom_call.1} parent=11 // pred_check
          %p442 = pneg %p242
        $region46: #{tpu_custom_call.1} parent=11 // pred_check_branch
          %444 = sbr.rel (%p442) target = $region48
        $region47: #{tpu_custom_call.1} parent=11 // pred_region
          _
        $region48: #{tpu_custom_call.1} parent=11 // pred_fallthru
          _
        // Predicated region
        $region49: #{tpu_custom_call.1} parent=11 // pred_check
          %p445 = pneg %p263
        $region50: #{tpu_custom_call.1} parent=11 // pred_check_branch
          %447 = sbr.rel (%p445) target = $region52
        $region51: #{tpu_custom_call.1} parent=11 // pred_region
          %s449 = ssub.s32 6144, 6144
          %450 = vsyncadd [#allocation12], %s449
          %s451 = sshll.u32 [#allocation11], 4
          %s452 = int_to_ptr.vmem [resolvable:$true] %s451
          %457 = dma.hbm_to_vmem [thread:$0]  %s10, 6144, %s452, [#allocation12], 128, 128, 8
        $region52: #{tpu_custom_call.1} parent=11 // pred_fallthru
          _
        // Predicated region
        $region53: #{tpu_custom_call.1} parent=11 // pred_check
          %p458 = pneg %p284
        $region54: #{tpu_custom_call.1} parent=11 // pred_check_branch
          %460 = sbr.rel (%p458) target = $region56
        $region55: #{tpu_custom_call.1} parent=11 // pred_region
          _
        $region56: #{tpu_custom_call.1} parent=11 // pred_fallthru
          _
        // Predicated region
        $region57: #{tpu_custom_call.1} parent=11 // pred_check
          %p461 = pneg %p305
        $region58: #{tpu_custom_call.1} parent=11 // pred_check_branch
          %463 = sbr.rel (%p461) target = $region60
        $region59: #{tpu_custom_call.1} parent=11 // pred_region
          _
        $region60: #{tpu_custom_call.1} parent=11 // pred_fallthru
          _
        // Predicated region
        $region61: #{tpu_custom_call.1} parent=11 // pred_check
          %p464 = pneg %p326
        $region62: #{tpu_custom_call.1} parent=11 // pred_check_branch
          %466 = sbr.rel (%p464) target = $region64
        $region63: #{tpu_custom_call.1} parent=11 // pred_region
          _
        $region64: #{tpu_custom_call.1} parent=11 // pred_fallthru
          _
        // Predicated region
        $region65: #{tpu_custom_call.1} parent=11 // pred_check
          %p467 = pneg %p347
        $region66: #{tpu_custom_call.1} parent=11 // pred_check_branch
          %469 = sbr.rel (%p467) target = $region68
        $region67: #{tpu_custom_call.1} parent=11 // pred_region
          _
        $region68: #{tpu_custom_call.1} parent=11 // pred_fallthru
          _
      $region12: #{tpu_custom_call.1} parent=5 // pred_fallthru
        _
      %p470 = scmp.lt.s32.totalorder %s27, 2
      // Predicated region
      $region69: #{tpu_custom_call.1} parent=5 // pred_check
        %p471 = pneg %p470
      $region70: #{tpu_custom_call.1} parent=5 // pred_check_branch
        %473 = sbr.rel (%p471) target = $region72
      $region71: #{tpu_custom_call.1} parent=5 // pred_region
        // Predicated region
        $region73: #{tpu_custom_call.1} parent=71 // pred_check
          %p474 = pneg %p47
        $region74: #{tpu_custom_call.1} parent=71 // pred_check_branch
          %476 = sbr.rel (%p474) target = $region76
        $region75: #{tpu_custom_call.1} parent=71 // pred_region
          %p477 = scmp.lt.s32.totalorder %s27, 1
          %s478 = scalar_select %p477, %s27, 1
          %s479 = smul.addr %s478, 4
          %s480 = scalar_lea.vmem %s0, %s479
        $region76: #{tpu_custom_call.1} parent=71 // pred_fallthru
          _
      $region72: #{tpu_custom_call.1} parent=5 // pred_fallthru
        _
      %p481 = scmp.le.s32.totalorder 1, %s27
      %p482 = scmp.lt.s32.totalorder %s27, 3
      %p483 = pnand %p481, %p482
      %p484 = pneg %p483
      // Predicated region
      $region77: #{tpu_custom_call.1} parent=5 // pred_check
        _
      $region78: #{tpu_custom_call.1} parent=5 // pred_check_branch
        %486 = sbr.rel (%p483) target = $region80
      $region79: #{tpu_custom_call.1} parent=5 // pred_region
        %s487 = ssub.s32 %s27, 1
        // Predicated region
        $region81: #{tpu_custom_call.1} parent=79 // pred_check
          %p488 = pneg %p74
        $region82: #{tpu_custom_call.1} parent=79 // pred_check_branch
          %490 = sbr.rel (%p488) target = $region84
        $region83: #{tpu_custom_call.1} parent=79 // pred_region
          %491 = dma.done [#allocation6], 3072
        $region84: #{tpu_custom_call.1} parent=79 // pred_fallthru
          _
        // Predicated region
        $region85: #{tpu_custom_call.1} parent=79 // pred_check
          %p492 = pneg %p137
        $region86: #{tpu_custom_call.1} parent=79 // pred_check_branch
          %494 = sbr.rel (%p492) target = $region88
        $region87: #{tpu_custom_call.1} parent=79 // pred_region
          %495 = dma.done [#allocation9], 6144
        $region88: #{tpu_custom_call.1} parent=79 // pred_fallthru
          _
        // Predicated region
        $region89: #{tpu_custom_call.1} parent=79 // pred_check
          %p496 = pneg %p200
        $region90: #{tpu_custom_call.1} parent=79 // pred_check_branch
          %498 = sbr.rel (%p496) target = $region92
        $region91: #{tpu_custom_call.1} parent=79 // pred_region
          %499 = dma.done [#allocation9], 6144
        $region92: #{tpu_custom_call.1} parent=79 // pred_fallthru
          _
        // Predicated region
        $region93: #{tpu_custom_call.1} parent=79 // pred_check
          %p500 = pneg %p263
        $region94: #{tpu_custom_call.1} parent=79 // pred_check_branch
          %502 = sbr.rel (%p500) target = $region96
        $region95: #{tpu_custom_call.1} parent=79 // pred_region
          %503 = dma.done [#allocation12], 6144
        $region96: #{tpu_custom_call.1} parent=79 // pred_fallthru
          _
        %p504 = scmp.lt.s32.totalorder %s32, 1
        %s505 = scalar_select %p504, %s32, 1
        %s506 = smul.addr %s505, 4
        %s507 = scalar_lea.vmem %s0, %s506
        %p508 = pneg %p53
        %p509 = pneg %p50
        %p510 = pneg %p74
        %p511 = pneg %p71
        %p512 = pneg %p95
        %p513 = pneg %p92
        %p514 = pneg %p116
        %p515 = pneg %p113
        %p516 = pneg %p137
        %p517 = pneg %p134
        %p518 = pneg %p158
        %p519 = pneg %p155
        %p520 = pneg %p179
        %p521 = pneg %p176
        %p522 = pneg %p200
        %p523 = pneg %p197
        %p524 = pneg %p221
        %p525 = pneg %p218
        %p526 = pneg %p242
        %p527 = pneg %p239
        %p528 = pneg %p263
        %p529 = pneg %p260
        %p530 = pneg %p284
        %p531 = pneg %p281
        %p532 = pneg %p305
        %p533 = pneg %p302
        %p534 = pneg %p326
        %p535 = pneg %p323
        %p536 = pneg %p347
        %p537 = pneg %p344
        %p538 = pneg %p373
        %p539 = pneg %p370
        %s540 = sand.u32 %s360, 1
        %s541 = scalar_lea.sflag [#allocation7], %s540
        %s542 = sand.u32 %s360, 1
        %s543 = smul.addr %s542, 4
        %s544 = scalar_lea.vmem [#allocation13], %s543
        %p545 = scmp.lt.s32.totalorder %s32, 1
        %s546 = scalar_select %p545, %s32, 1
        %s547 = smul.addr %s546, 4
        %s548 = scalar_lea.vmem %s0, %s547
        %v550 = vld [vmem:[%s548] sm:$0x7]
        %v551 = vld [vmem:[#allocation5] sm:$0xff]
        %v552 = vld [vmem:[#allocation5 + $0x8] sm:$0xff]
        %v553 = vld [vmem:[#allocation5 + $0x10] sm:$0xff]
        %v554 = vld [vmem:[#allocation5 + $0x18] sm:$0xff]
        %v555 = vld [vmem:[#allocation5 + $0x20] sm:$0xff]
        %v556 = vld [vmem:[#allocation5 + $0x28] sm:$0xff]
        %v557 = vld [vmem:[#allocation5 + $0x30] sm:$0xff]
        %v558 = vld [vmem:[#allocation5 + $0x38] sm:$0xff]
        %s559 = scalar_lea.vmem [#allocation5], 64
        %v560 = vld [vmem:[%s559] sm:$0xff]
        %v561 = vld [vmem:[%s559 + $0x8] sm:$0xff]
        %v562 = vld [vmem:[%s559 + $0x10] sm:$0xff]
        %v563 = vld [vmem:[%s559 + $0x18] sm:$0xff]
        %v564 = vld [vmem:[%s559 + $0x20] sm:$0xff]
        %v565 = vld [vmem:[%s559 + $0x28] sm:$0xff]
        %v566 = vld [vmem:[%s559 + $0x30] sm:$0xff]
        %v567 = vld [vmem:[%s559 + $0x38] sm:$0xff]
        %v569 = vunpack.c.l.b16 %v550
        %v570 = vpack.c.b16 %v569, %v569
        %v572 = vshrl.u32 %v570, 16
        %v574 = vshll.u32 %v570, 16
        %v576 = vrot.slane %v574, 1
        %v577 = vor.u32 %v572, %v576
        %v586 = vunpack.c.l.b16 %v560
        %v587 = vunpack.c.h.b16 %v560
        %v588 = vunpack.c.l.b16 %v561
        %v589 = vunpack.c.h.b16 %v561
        %v590 = vunpack.c.l.b16 %v562
        %v591 = vunpack.c.h.b16 %v562
        %v592 = vunpack.c.l.b16 %v563
        %v593 = vunpack.c.h.b16 %v563
        %v594 = vunpack.c.l.b16 %v564
        %v595 = vunpack.c.h.b16 %v564
        %v596 = vunpack.c.l.b16 %v565
        %v597 = vunpack.c.h.b16 %v565
        %v598 = vunpack.c.l.b16 %v566
        %v599 = vunpack.c.h.b16 %v566
        %v600 = vunpack.c.l.b16 %v567
        %v601 = vunpack.c.h.b16 %v567
        %v602 = vpack.c.b16 %v588, %v586
        %v603 = vpack.c.b16 %v589, %v587
        %v604 = vpack.c.b16 %v592, %v590
        %v605 = vpack.c.b16 %v593, %v591
        %v606 = vpack.c.b16 %v596, %v594
        %v607 = vpack.c.b16 %v597, %v595
        %v608 = vpack.c.b16 %v600, %v598
        %v609 = vpack.c.b16 %v601, %v599
        %vm618 = vcmask 523264
        %v620 = vsel %vm618, %v577, 0
        %622 = vmatprep.subr.bf16.mxu0 %v603
        %623 = vmatpush1.bf16.msra.mxu0 %v602
        %624 = vmatprep.subr.bf16.mxu0 %v605
        %625 = vmatpush1.bf16.msra.mxu0 %v604
        %626 = vmatprep.subr.bf16.mxu0 %v607
        %627 = vmatpush1.bf16.msra.mxu0 %v606
        %628 = vmatprep.subr.bf16.mxu0 %v609
        %629 = vmatpush1.bf16.msra.mxu0 %v608
        %630 = vmatprep.subr.bf16.mxu0 0
        %631 = vmatpush1.bf16.msra.mxu0 0
        %632 = vmatprep.subr.bf16.mxu0 0
        %633 = vmatpush1.bf16.msra.mxu0 0
        %634 = vmatprep.subr.bf16.mxu0 0
        %635 = vmatpush1.bf16.msra.mxu0 0
        %636 = vmatprep.subr.bf16.mxu0 0
        %637 = vmatpush1.bf16.msra.mxu0 0
        %638 = vmatprep.subr.bf16.mxu0 0
        %639 = vmatpush1.bf16.msra.mxu0 0
        %640 = vmatprep.subr.bf16.mxu0 0
        %641 = vmatpush1.bf16.msra.mxu0 0
        %642 = vmatprep.subr.bf16.mxu0 0
        %643 = vmatpush1.bf16.msra.mxu0 0
        %644 = vmatprep.subr.bf16.mxu0 0
        %645 = vmatpush1.bf16.msra.mxu0 0
        %646 = vmatprep.subr.bf16.mxu0 0
        %647 = vmatpush1.bf16.msra.mxu0 0
        %648 = vmatprep.subr.bf16.mxu0 0
        %649 = vmatpush1.bf16.msra.mxu0 0
        %650 = vmatprep.subr.bf16.mxu0 0
        %651 = vmatpush1.bf16.msra.mxu0 0
        %652 = vmatprep.subr.bf16.mxu0 0
        %653 = vmatpush1.bf16.msra.mxu0 0
        %654 = vmatprep.mubr.bf16.mxu0 0
        %655 = vmatmul.mubr.bf16.gmra.mrb[0].mxu0 %v620
        %v656 = vpop.f32.mrb[0].mxu0
        %v657 = vadd.f32 0.0, %v656
        %v658 = vpop.f32.mrb[0].mxu0
        %v659 = vadd.f32 0.0, %v658
        %v660 = vpop.f32.mrb[0].mxu0
        %v661 = vpop.f32.mrb[0].mxu0
        %662 = vdwg.mxu0
        %v671 = vunpack.c.l.b16 %v551
        %v672 = vunpack.c.h.b16 %v551
        %v673 = vunpack.c.l.b16 %v552
        %v674 = vunpack.c.h.b16 %v552
        %v675 = vunpack.c.l.b16 %v553
        %v676 = vunpack.c.h.b16 %v553
        %v677 = vunpack.c.l.b16 %v554
        %v678 = vunpack.c.h.b16 %v554
        %v679 = vunpack.c.l.b16 %v555
        %v680 = vunpack.c.h.b16 %v555
        %v681 = vunpack.c.l.b16 %v556
        %v682 = vunpack.c.h.b16 %v556
        %v683 = vunpack.c.l.b16 %v557
        %v684 = vunpack.c.h.b16 %v557
        %v685 = vunpack.c.l.b16 %v558
        %v686 = vunpack.c.h.b16 %v558
        %v687 = vpack.c.b16 %v673, %v671
        %v688 = vpack.c.b16 %v674, %v672
        %v689 = vpack.c.b16 %v677, %v675
        %v690 = vpack.c.b16 %v678, %v676
        %v691 = vpack.c.b16 %v681, %v679
        %v692 = vpack.c.b16 %v682, %v680
        %v693 = vpack.c.b16 %v685, %v683
        %v694 = vpack.c.b16 %v686, %v684
        %v704 = vsel %vm618, %v550, 0
        %706 = vmatprep.subr.bf16.mxu0 %v688
        %707 = vmatpush1.bf16.msra.mxu0 %v687
        %708 = vmatprep.subr.bf16.mxu0 %v690
        %709 = vmatpush1.bf16.msra.mxu0 %v689
        %710 = vmatprep.subr.bf16.mxu0 %v692
        %711 = vmatpush1.bf16.msra.mxu0 %v691
        %712 = vmatprep.subr.bf16.mxu0 %v694
        %713 = vmatpush1.bf16.msra.mxu0 %v693
        %714 = vmatprep.subr.bf16.mxu0 0
        %715 = vmatpush1.bf16.msra.mxu0 0
        %716 = vmatprep.subr.bf16.mxu0 0
        %717 = vmatpush1.bf16.msra.mxu0 0
        %718 = vmatprep.subr.bf16.mxu0 0
        %719 = vmatpush1.bf16.msra.mxu0 0
        %720 = vmatprep.subr.bf16.mxu0 0
        %721 = vmatpush1.bf16.msra.mxu0 0
        %722 = vmatprep.subr.bf16.mxu0 0
        %723 = vmatpush1.bf16.msra.mxu0 0
        %724 = vmatprep.subr.bf16.mxu0 0
        %725 = vmatpush1.bf16.msra.mxu0 0
        %726 = vmatprep.subr.bf16.mxu0 0
        %727 = vmatpush1.bf16.msra.mxu0 0
        %728 = vmatprep.subr.bf16.mxu0 0
        %729 = vmatpush1.bf16.msra.mxu0 0
        %730 = vmatprep.subr.bf16.mxu0 0
        %731 = vmatpush1.bf16.msra.mxu0 0
        %732 = vmatprep.subr.bf16.mxu0 0
        %733 = vmatpush1.bf16.msra.mxu0 0
        %734 = vmatprep.subr.bf16.mxu0 0
        %735 = vmatpush1.bf16.msra.mxu0 0
        %736 = vmatprep.subr.bf16.mxu0 0
        %737 = vmatpush1.bf16.msra.mxu0 0
        %738 = vmatprep.mubr.bf16.mxu0 0
        %739 = vmatmul.mubr.bf16.gmra.mrb[0].mxu0 %v704
        %v740 = vpop.f32.mrb[0].mxu0
        %v741 = vadd.f32 %v657, %v740
        %v742 = vpop.f32.mrb[0].mxu0
        %v743 = vadd.f32 %v659, %v742
        %v744 = vpop.f32.mrb[0].mxu0
        %v745 = vpop.f32.mrb[0].mxu0
        %746 = vdwg.mxu0
        %s747 = scalar_lea.vmem [#allocation5], 128
        %v748 = vld [vmem:[%s747] sm:$0xff]
        %v749 = vld [vmem:[%s747 + $0x8] sm:$0xff]
        %v750 = vld [vmem:[%s747 + $0x10] sm:$0xff]
        %v751 = vld [vmem:[%s747 + $0x18] sm:$0xff]
        %v752 = vld [vmem:[%s747 + $0x20] sm:$0xff]
        %v753 = vld [vmem:[%s747 + $0x28] sm:$0xff]
        %v754 = vld [vmem:[%s747 + $0x30] sm:$0xff]
        %v755 = vld [vmem:[%s747 + $0x38] sm:$0xff]
        %v756 = vrot.slane %v570, 1
        %v765 = vunpack.c.l.b16 %v748
        %v766 = vunpack.c.h.b16 %v748
        %v767 = vunpack.c.l.b16 %v749
        %v768 = vunpack.c.h.b16 %v749
        %v769 = vunpack.c.l.b16 %v750
        %v770 = vunpack.c.h.b16 %v750
        %v771 = vunpack.c.l.b16 %v751
        %v772 = vunpack.c.h.b16 %v751
        %v773 = vunpack.c.l.b16 %v752
        %v774 = vunpack.c.h.b16 %v752
        %v775 = vunpack.c.l.b16 %v753
        %v776 = vunpack.c.h.b16 %v753
        %v777 = vunpack.c.l.b16 %v754
        %v778 = vunpack.c.h.b16 %v754
        %v779 = vunpack.c.l.b16 %v755
        %v780 = vunpack.c.h.b16 %v755
        %v781 = vpack.c.b16 %v767, %v765
        %v782 = vpack.c.b16 %v768, %v766
        %v783 = vpack.c.b16 %v771, %v769
        %v784 = vpack.c.b16 %v772, %v770
        %v785 = vpack.c.b16 %v775, %v773
        %v786 = vpack.c.b16 %v776, %v774
        %v787 = vpack.c.b16 %v779, %v777
        %v788 = vpack.c.b16 %v780, %v778
        %v798 = vsel %vm618, %v756, 0
        %800 = vmatprep.subr.bf16.mxu0 %v782
        %801 = vmatpush1.bf16.msra.mxu0 %v781
        %802 = vmatprep.subr.bf16.mxu0 %v784
        %803 = vmatpush1.bf16.msra.mxu0 %v783
        %804 = vmatprep.subr.bf16.mxu0 %v786
        %805 = vmatpush1.bf16.msra.mxu0 %v785
        %806 = vmatprep.subr.bf16.mxu0 %v788
        %807 = vmatpush1.bf16.msra.mxu0 %v787
        %808 = vmatprep.subr.bf16.mxu0 0
        %809 = vmatpush1.bf16.msra.mxu0 0
        %810 = vmatprep.subr.bf16.mxu0 0
        %811 = vmatpush1.bf16.msra.mxu0 0
        %812 = vmatprep.subr.bf16.mxu0 0
        %813 = vmatpush1.bf16.msra.mxu0 0
        %814 = vmatprep.subr.bf16.mxu0 0
        %815 = vmatpush1.bf16.msra.mxu0 0
        %816 = vmatprep.subr.bf16.mxu0 0
        %817 = vmatpush1.bf16.msra.mxu0 0
        %818 = vmatprep.subr.bf16.mxu0 0
        %819 = vmatpush1.bf16.msra.mxu0 0
        %820 = vmatprep.subr.bf16.mxu0 0
        %821 = vmatpush1.bf16.msra.mxu0 0
        %822 = vmatprep.subr.bf16.mxu0 0
        %823 = vmatpush1.bf16.msra.mxu0 0
        %824 = vmatprep.subr.bf16.mxu0 0
        %825 = vmatpush1.bf16.msra.mxu0 0
        %826 = vmatprep.subr.bf16.mxu0 0
        %827 = vmatpush1.bf16.msra.mxu0 0
        %828 = vmatprep.subr.bf16.mxu0 0
        %829 = vmatpush1.bf16.msra.mxu0 0
        %830 = vmatprep.subr.bf16.mxu0 0
        %831 = vmatpush1.bf16.msra.mxu0 0
        %832 = vmatprep.mubr.bf16.mxu0 0
        %833 = vmatmul.mubr.bf16.gmra.mrb[0].mxu0 %v798
        %v834 = vpop.f32.mrb[0].mxu0
        %v835 = vadd.f32 0.0, %v834
        %v836 = vpop.f32.mrb[0].mxu0
        %v837 = vadd.f32 0.0, %v836
        %v838 = vpop.f32.mrb[0].mxu0
        %v839 = vpop.f32.mrb[0].mxu0
        %840 = vdwg.mxu0
        %v841 = vadd.f32 %v741, %v835
        %v842 = vadd.f32 %v743, %v837
        %v843 = vld [vmem:[%s2] sm:$0x1]
        %v844 = vld [vmem:[%s3] sm:$0x1]
        %v846 = vlaneseq
        %v847 = vshrl.u32 %v846, 7
        %v848 = vsub.s32 0, %v847
        %v849 = vrot.slane %v843, %v848
        %v851 = vmul.f32 %v841, %v849
        %v853 = vlaneseq
        %v854 = vshrl.u32 %v853, 7
        %v855 = vsub.s32 0, %v854
        %v856 = vrot.slane %v844, %v855
        %v858 = vadd.f32 %v851, %v856
        %v859 = vmul.f32 %v842, %v849
        %v860 = vadd.f32 %v859, %v856
        %v861 = vmax.f32 %v858, %v860
        %v862 = vmax.f32 %v861, 0.0
        %863 = vst [vmem:[#allocation2] sm:$0x7] 0
        %v864 = vpack.c.bf16 %v862, %v862
        %v866 = vunpack.c.l.b16 %v864
        %v867 = vpack.c.b16 %v866, %v866
        %v869 = vshrl.u32 %v867, 16
        %v871 = vrot.slane %v869, 7
        %v872 = vshll.u32 %v867, 16
        %v874 = vor.u32 %v871, %v872
        %vm876 = vcmask 1042432
        %vm877 = vsmask.f32 2306
        %vm878 = vmand %vm876, %vm877
        %v879 = vld [vmem:[#allocation2] sm:$0x7]
        %v880 = vsel %vm878, %v874, %v879
        %881 = vst [vmem:[#allocation2] sm:$0x7] %v880
        %v882 = vld [vmem:[#allocation2] sm:$0x7]
        %v883 = vld [vmem:[#allocation8] sm:$0xff]
        %v884 = vld [vmem:[#allocation8 + $0x8] sm:$0xff]
        %v885 = vld [vmem:[#allocation8 + $0x10] sm:$0xff]
        %v886 = vld [vmem:[#allocation8 + $0x18] sm:$0xff]
        %v887 = vld [vmem:[#allocation8 + $0x20] sm:$0xff]
        %v888 = vld [vmem:[#allocation8 + $0x28] sm:$0xff]
        %v889 = vld [vmem:[#allocation8 + $0x30] sm:$0xff]
        %v890 = vld [vmem:[#allocation8 + $0x38] sm:$0xff]
        %v891 = vld [vmem:[#allocation8 + $0x40] sm:$0xff]
        %v892 = vld [vmem:[#allocation8 + $0x48] sm:$0xff]
        %v893 = vld [vmem:[#allocation8 + $0x50] sm:$0xff]
        %v894 = vld [vmem:[#allocation8 + $0x58] sm:$0xff]
        %v895 = vld [vmem:[#allocation8 + $0x60] sm:$0xff]
        %v896 = vld [vmem:[#allocation8 + $0x68] sm:$0xff]
        %v897 = vld [vmem:[#allocation8 + $0x70] sm:$0xff]
        %v898 = vld [vmem:[#allocation8 + $0x78] sm:$0xff]
        %s899 = scalar_lea.vmem [#allocation8], 128
        %v900 = vld [vmem:[%s899] sm:$0xff]
        %v901 = vld [vmem:[%s899 + $0x8] sm:$0xff]
        %v902 = vld [vmem:[%s899 + $0x10] sm:$0xff]
        %v903 = vld [vmem:[%s899 + $0x18] sm:$0xff]
        %v904 = vld [vmem:[%s899 + $0x20] sm:$0xff]
        %v905 = vld [vmem:[%s899 + $0x28] sm:$0xff]
        %v906 = vld [vmem:[%s899 + $0x30] sm:$0xff]
        %v907 = vld [vmem:[%s899 + $0x38] sm:$0xff]
        %v908 = vld [vmem:[%s899 + $0x40] sm:$0xff]
        %v909 = vld [vmem:[%s899 + $0x48] sm:$0xff]
        %v910 = vld [vmem:[%s899 + $0x50] sm:$0xff]
        %v911 = vld [vmem:[%s899 + $0x58] sm:$0xff]
        %v912 = vld [vmem:[%s899 + $0x60] sm:$0xff]
        %v913 = vld [vmem:[%s899 + $0x68] sm:$0xff]
        %v914 = vld [vmem:[%s899 + $0x70] sm:$0xff]
        %v915 = vld [vmem:[%s899 + $0x78] sm:$0xff]
        %v917 = vunpack.c.l.b16 %v882
        %v918 = vpack.c.b16 %v917, %v917
        %v920 = vshrl.u32 %v918, 16
        %v922 = vshll.u32 %v918, 16
        %v924 = vrot.slane %v922, 1
        %v925 = vor.u32 %v920, %v924
        %v943 = vunpack.c.l.b16 %v900
        %v944 = vunpack.c.h.b16 %v900
        %v945 = vunpack.c.l.b16 %v901
        %v946 = vunpack.c.h.b16 %v901
        %v947 = vunpack.c.l.b16 %v902
        %v948 = vunpack.c.h.b16 %v902
        %v949 = vunpack.c.l.b16 %v903
        %v950 = vunpack.c.h.b16 %v903
        %v951 = vunpack.c.l.b16 %v904
        %v952 = vunpack.c.h.b16 %v904
        %v953 = vunpack.c.l.b16 %v905
        %v954 = vunpack.c.h.b16 %v905
        %v955 = vunpack.c.l.b16 %v906
        %v956 = vunpack.c.h.b16 %v906
        %v957 = vunpack.c.l.b16 %v907
        %v958 = vunpack.c.h.b16 %v907
        %v959 = vunpack.c.l.b16 %v908
        %v960 = vunpack.c.h.b16 %v908
        %v961 = vunpack.c.l.b16 %v909
        %v962 = vunpack.c.h.b16 %v909
        %v963 = vunpack.c.l.b16 %v910
        %v964 = vunpack.c.h.b16 %v910
        %v965 = vunpack.c.l.b16 %v911
        %v966 = vunpack.c.h.b16 %v911
        %v967 = vunpack.c.l.b16 %v912
        %v968 = vunpack.c.h.b16 %v912
        %v969 = vunpack.c.l.b16 %v913
        %v970 = vunpack.c.h.b16 %v913
        %v971 = vunpack.c.l.b16 %v914
        %v972 = vunpack.c.h.b16 %v914
        %v973 = vunpack.c.l.b16 %v915
        %v974 = vunpack.c.h.b16 %v915
        %v975 = vpack.c.b16 %v945, %v943
        %v976 = vpack.c.b16 %v946, %v944
        %v977 = vpack.c.b16 %v949, %v947
        %v978 = vpack.c.b16 %v950, %v948
        %v979 = vpack.c.b16 %v953, %v951
        %v980 = vpack.c.b16 %v954, %v952
        %v981 = vpack.c.b16 %v957, %v955
        %v982 = vpack.c.b16 %v958, %v956
        %v983 = vpack.c.b16 %v961, %v959
        %v984 = vpack.c.b16 %v962, %v960
        %v985 = vpack.c.b16 %v965, %v963
        %v986 = vpack.c.b16 %v966, %v964
        %v987 = vpack.c.b16 %v969, %v967
        %v988 = vpack.c.b16 %v970, %v968
        %v989 = vpack.c.b16 %v973, %v971
        %v990 = vpack.c.b16 %v974, %v972
        %1007 = vmatprep.subr.bf16.mxu0 %v976
        %1008 = vmatpush1.bf16.msra.mxu0 %v975
        %1009 = vmatprep.subr.bf16.mxu0 %v978
        %1010 = vmatpush1.bf16.msra.mxu0 %v977
        %1011 = vmatprep.subr.bf16.mxu0 %v980
        %1012 = vmatpush1.bf16.msra.mxu0 %v979
        %1013 = vmatprep.subr.bf16.mxu0 %v982
        %1014 = vmatpush1.bf16.msra.mxu0 %v981
        %1015 = vmatprep.subr.bf16.mxu0 %v984
        %1016 = vmatpush1.bf16.msra.mxu0 %v983
        %1017 = vmatprep.subr.bf16.mxu0 %v986
        %1018 = vmatpush1.bf16.msra.mxu0 %v985
        %1019 = vmatprep.subr.bf16.mxu0 %v988
        %1020 = vmatpush1.bf16.msra.mxu0 %v987
        %1021 = vmatprep.subr.bf16.mxu0 %v990
        %1022 = vmatpush1.bf16.msra.mxu0 %v989
        %1023 = vmatprep.subr.bf16.mxu0 0
        %1024 = vmatpush1.bf16.msra.mxu0 0
        %1025 = vmatprep.subr.bf16.mxu0 0
        %1026 = vmatpush1.bf16.msra.mxu0 0
        %1027 = vmatprep.subr.bf16.mxu0 0
        %1028 = vmatpush1.bf16.msra.mxu0 0
        %1029 = vmatprep.subr.bf16.mxu0 0
        %1030 = vmatpush1.bf16.msra.mxu0 0
        %1031 = vmatprep.subr.bf16.mxu0 0
        %1032 = vmatpush1.bf16.msra.mxu0 0
        %1033 = vmatprep.subr.bf16.mxu0 0
        %1034 = vmatpush1.bf16.msra.mxu0 0
        %1035 = vmatprep.subr.bf16.mxu0 0
        %1036 = vmatpush1.bf16.msra.mxu0 0
        %1037 = vmatprep.subr.bf16.mxu0 0
        %1038 = vmatpush1.bf16.msra.mxu0 0
        %1039 = vmatprep.mubr.bf16.mxu0 0
        %1040 = vmatmul.mubr.bf16.gmra.mrb[0].mxu0 %v925
        %v1041 = vpop.f32.mrb[0].mxu0
        %v1042 = vadd.f32 0.0, %v1041
        %v1043 = vpop.f32.mrb[0].mxu0
        %v1044 = vadd.f32 0.0, %v1043
        %v1045 = vpop.f32.mrb[0].mxu0
        %v1046 = vpop.f32.mrb[0].mxu0
        %1047 = vdwg.mxu0
        %v1064 = vunpack.c.l.b16 %v883
        %v1065 = vunpack.c.h.b16 %v883
        %v1066 = vunpack.c.l.b16 %v884
        %v1067 = vunpack.c.h.b16 %v884
        %v1068 = vunpack.c.l.b16 %v885
        %v1069 = vunpack.c.h.b16 %v885
        %v1070 = vunpack.c.l.b16 %v886
        %v1071 = vunpack.c.h.b16 %v886
        %v1072 = vunpack.c.l.b16 %v887
        %v1073 = vunpack.c.h.b16 %v887
        %v1074 = vunpack.c.l.b16 %v888
        %v1075 = vunpack.c.h.b16 %v888
        %v1076 = vunpack.c.l.b16 %v889
        %v1077 = vunpack.c.h.b16 %v889
        %v1078 = vunpack.c.l.b16 %v890
        %v1079 = vunpack.c.h.b16 %v890
        %v1080 = vunpack.c.l.b16 %v891
        %v1081 = vunpack.c.h.b16 %v891
        %v1082 = vunpack.c.l.b16 %v892
        %v1083 = vunpack.c.h.b16 %v892
        %v1084 = vunpack.c.l.b16 %v893
        %v1085 = vunpack.c.h.b16 %v893
        %v1086 = vunpack.c.l.b16 %v894
        %v1087 = vunpack.c.h.b16 %v894
        %v1088 = vunpack.c.l.b16 %v895
        %v1089 = vunpack.c.h.b16 %v895
        %v1090 = vunpack.c.l.b16 %v896
        %v1091 = vunpack.c.h.b16 %v896
        %v1092 = vunpack.c.l.b16 %v897
        %v1093 = vunpack.c.h.b16 %v897
        %v1094 = vunpack.c.l.b16 %v898
        %v1095 = vunpack.c.h.b16 %v898
        %v1096 = vpack.c.b16 %v1066, %v1064
        %v1097 = vpack.c.b16 %v1067, %v1065
        %v1098 = vpack.c.b16 %v1070, %v1068
        %v1099 = vpack.c.b16 %v1071, %v1069
        %v1100 = vpack.c.b16 %v1074, %v1072
        %v1101 = vpack.c.b16 %v1075, %v1073
        %v1102 = vpack.c.b16 %v1078, %v1076
        %v1103 = vpack.c.b16 %v1079, %v1077
        %v1104 = vpack.c.b16 %v1082, %v1080
        %v1105 = vpack.c.b16 %v1083, %v1081
        %v1106 = vpack.c.b16 %v1086, %v1084
        %v1107 = vpack.c.b16 %v1087, %v1085
        %v1108 = vpack.c.b16 %v1090, %v1088
        %v1109 = vpack.c.b16 %v1091, %v1089
        %v1110 = vpack.c.b16 %v1094, %v1092
        %v1111 = vpack.c.b16 %v1095, %v1093
        %1128 = vmatprep.subr.bf16.mxu0 %v1097
        %1129 = vmatpush1.bf16.msra.mxu0 %v1096
        %1130 = vmatprep.subr.bf16.mxu0 %v1099
        %1131 = vmatpush1.bf16.msra.mxu0 %v1098
        %1132 = vmatprep.subr.bf16.mxu0 %v1101
        %1133 = vmatpush1.bf16.msra.mxu0 %v1100
        %1134 = vmatprep.subr.bf16.mxu0 %v1103
        %1135 = vmatpush1.bf16.msra.mxu0 %v1102
        %1136 = vmatprep.subr.bf16.mxu0 %v1105
        %1137 = vmatpush1.bf16.msra.mxu0 %v1104
        %1138 = vmatprep.subr.bf16.mxu0 %v1107
        %1139 = vmatpush1.bf16.msra.mxu0 %v1106
        %1140 = vmatprep.subr.bf16.mxu0 %v1109
        %1141 = vmatpush1.bf16.msra.mxu0 %v1108
        %1142 = vmatprep.subr.bf16.mxu0 %v1111
        %1143 = vmatpush1.bf16.msra.mxu0 %v1110
        %1144 = vmatprep.subr.bf16.mxu0 0
        %1145 = vmatpush1.bf16.msra.mxu0 0
        %1146 = vmatprep.subr.bf16.mxu0 0
        %1147 = vmatpush1.bf16.msra.mxu0 0
        %1148 = vmatprep.subr.bf16.mxu0 0
        %1149 = vmatpush1.bf16.msra.mxu0 0
        %1150 = vmatprep.subr.bf16.mxu0 0
        %1151 = vmatpush1.bf16.msra.mxu0 0
        %1152 = vmatprep.subr.bf16.mxu0 0
        %1153 = vmatpush1.bf16.msra.mxu0 0
        %1154 = vmatprep.subr.bf16.mxu0 0
        %1155 = vmatpush1.bf16.msra.mxu0 0
        %1156 = vmatprep.subr.bf16.mxu0 0
        %1157 = vmatpush1.bf16.msra.mxu0 0
        %1158 = vmatprep.subr.bf16.mxu0 0
        %1159 = vmatpush1.bf16.msra.mxu0 0
        %1160 = vmatprep.mubr.bf16.mxu0 0
        %1161 = vmatmul.mubr.bf16.gmra.mrb[0].mxu0 %v882
        %v1162 = vpop.f32.mrb[0].mxu0
        %v1163 = vadd.f32 %v1042, %v1162
        %v1164 = vpop.f32.mrb[0].mxu0
        %v1165 = vadd.f32 %v1044, %v1164
        %v1166 = vpop.f32.mrb[0].mxu0
        %v1167 = vpop.f32.mrb[0].mxu0
        %1168 = vdwg.mxu0
        %s1169 = scalar_lea.vmem [#allocation8], 256
        %v1170 = vld [vmem:[%s1169] sm:$0xff]
        %v1171 = vld [vmem:[%s1169 + $0x8] sm:$0xff]
        %v1172 = vld [vmem:[%s1169 + $0x10] sm:$0xff]
        %v1173 = vld [vmem:[%s1169 + $0x18] sm:$0xff]
        %v1174 = vld [vmem:[%s1169 + $0x20] sm:$0xff]
        %v1175 = vld [vmem:[%s1169 + $0x28] sm:$0xff]
        %v1176 = vld [vmem:[%s1169 + $0x30] sm:$0xff]
        %v1177 = vld [vmem:[%s1169 + $0x38] sm:$0xff]
        %v1178 = vld [vmem:[%s1169 + $0x40] sm:$0xff]
        %v1179 = vld [vmem:[%s1169 + $0x48] sm:$0xff]
        %v1180 = vld [vmem:[%s1169 + $0x50] sm:$0xff]
        %v1181 = vld [vmem:[%s1169 + $0x58] sm:$0xff]
        %v1182 = vld [vmem:[%s1169 + $0x60] sm:$0xff]
        %v1183 = vld [vmem:[%s1169 + $0x68] sm:$0xff]
        %v1184 = vld [vmem:[%s1169 + $0x70] sm:$0xff]
        %v1185 = vld [vmem:[%s1169 + $0x78] sm:$0xff]
        %v1186 = vrot.slane %v918, 1
        %v1204 = vunpack.c.l.b16 %v1170
        %v1205 = vunpack.c.h.b16 %v1170
        %v1206 = vunpack.c.l.b16 %v1171
        %v1207 = vunpack.c.h.b16 %v1171
        %v1208 = vunpack.c.l.b16 %v1172
        %v1209 = vunpack.c.h.b16 %v1172
        %v1210 = vunpack.c.l.b16 %v1173
        %v1211 = vunpack.c.h.b16 %v1173
        %v1212 = vunpack.c.l.b16 %v1174
        %v1213 = vunpack.c.h.b16 %v1174
        %v1214 = vunpack.c.l.b16 %v1175
        %v1215 = vunpack.c.h.b16 %v1175
        %v1216 = vunpack.c.l.b16 %v1176
        %v1217 = vunpack.c.h.b16 %v1176
        %v1218 = vunpack.c.l.b16 %v1177
        %v1219 = vunpack.c.h.b16 %v1177
        %v1220 = vunpack.c.l.b16 %v1178
        %v1221 = vunpack.c.h.b16 %v1178
        %v1222 = vunpack.c.l.b16 %v1179
        %v1223 = vunpack.c.h.b16 %v1179
        %v1224 = vunpack.c.l.b16 %v1180
        %v1225 = vunpack.c.h.b16 %v1180
        %v1226 = vunpack.c.l.b16 %v1181
        %v1227 = vunpack.c.h.b16 %v1181
        %v1228 = vunpack.c.l.b16 %v1182
        %v1229 = vunpack.c.h.b16 %v1182
        %v1230 = vunpack.c.l.b16 %v1183
        %v1231 = vunpack.c.h.b16 %v1183
        %v1232 = vunpack.c.l.b16 %v1184
        %v1233 = vunpack.c.h.b16 %v1184
        %v1234 = vunpack.c.l.b16 %v1185
        %v1235 = vunpack.c.h.b16 %v1185
        %v1236 = vpack.c.b16 %v1206, %v1204
        %v1237 = vpack.c.b16 %v1207, %v1205
        %v1238 = vpack.c.b16 %v1210, %v1208
        %v1239 = vpack.c.b16 %v1211, %v1209
        %v1240 = vpack.c.b16 %v1214, %v1212
        %v1241 = vpack.c.b16 %v1215, %v1213
        %v1242 = vpack.c.b16 %v1218, %v1216
        %v1243 = vpack.c.b16 %v1219, %v1217
        %v1244 = vpack.c.b16 %v1222, %v1220
        %v1245 = vpack.c.b16 %v1223, %v1221
        %v1246 = vpack.c.b16 %v1226, %v1224
        %v1247 = vpack.c.b16 %v1227, %v1225
        %v1248 = vpack.c.b16 %v1230, %v1228
        %v1249 = vpack.c.b16 %v1231, %v1229
        %v1250 = vpack.c.b16 %v1234, %v1232
        %v1251 = vpack.c.b16 %v1235, %v1233
        %1268 = vmatprep.subr.bf16.mxu0 %v1237
        %1269 = vmatpush1.bf16.msra.mxu0 %v1236
        %1270 = vmatprep.subr.bf16.mxu0 %v1239
        %1271 = vmatpush1.bf16.msra.mxu0 %v1238
        %1272 = vmatprep.subr.bf16.mxu0 %v1241
        %1273 = vmatpush1.bf16.msra.mxu0 %v1240
        %1274 = vmatprep.subr.bf16.mxu0 %v1243
        %1275 = vmatpush1.bf16.msra.mxu0 %v1242
        %1276 = vmatprep.subr.bf16.mxu0 %v1245
        %1277 = vmatpush1.bf16.msra.mxu0 %v1244
        %1278 = vmatprep.subr.bf16.mxu0 %v1247
        %1279 = vmatpush1.bf16.msra.mxu0 %v1246
        %1280 = vmatprep.subr.bf16.mxu0 %v1249
        %1281 = vmatpush1.bf16.msra.mxu0 %v1248
        %1282 = vmatprep.subr.bf16.mxu0 %v1251
        %1283 = vmatpush1.bf16.msra.mxu0 %v1250
        %1284 = vmatprep.subr.bf16.mxu0 0
        %1285 = vmatpush1.bf16.msra.mxu0 0
        %1286 = vmatprep.subr.bf16.mxu0 0
        %1287 = vmatpush1.bf16.msra.mxu0 0
        %1288 = vmatprep.subr.bf16.mxu0 0
        %1289 = vmatpush1.bf16.msra.mxu0 0
        %1290 = vmatprep.subr.bf16.mxu0 0
        %1291 = vmatpush1.bf16.msra.mxu0 0
        %1292 = vmatprep.subr.bf16.mxu0 0
        %1293 = vmatpush1.bf16.msra.mxu0 0
        %1294 = vmatprep.subr.bf16.mxu0 0
        %1295 = vmatpush1.bf16.msra.mxu0 0
        %1296 = vmatprep.subr.bf16.mxu0 0
        %1297 = vmatpush1.bf16.msra.mxu0 0
        %1298 = vmatprep.subr.bf16.mxu0 0
        %1299 = vmatpush1.bf16.msra.mxu0 0
        %1300 = vmatprep.mubr.bf16.mxu0 0
        %1301 = vmatmul.mubr.bf16.gmra.mrb[0].mxu0 %v1186
        %v1302 = vpop.f32.mrb[0].mxu0
        %v1303 = vadd.f32 0.0, %v1302
        %v1304 = vpop.f32.mrb[0].mxu0
        %v1305 = vadd.f32 0.0, %v1304
        %v1306 = vpop.f32.mrb[0].mxu0
        %v1307 = vpop.f32.mrb[0].mxu0
        %1308 = vdwg.mxu0
        %v1309 = vadd.f32 %v1163, %v1303
        %v1310 = vadd.f32 %v1165, %v1305
        %v1311 = vld [vmem:[%s5] sm:$0x1]
        %v1312 = vld [vmem:[%s6] sm:$0x1]
        %v1314 = vlaneseq
        %v1315 = vshrl.u32 %v1314, 7
        %v1316 = vsub.s32 0, %v1315
        %v1317 = vrot.slane %v1311, %v1316
        %v1319 = vmul.f32 %v1309, %v1317
        %v1321 = vlaneseq
        %v1322 = vshrl.u32 %v1321, 7
        %v1323 = vsub.s32 0, %v1322
        %v1324 = vrot.slane %v1312, %v1323
        %v1326 = vadd.f32 %v1319, %v1324
        %v1327 = vmul.f32 %v1310, %v1317
        %v1328 = vadd.f32 %v1327, %v1324
        %v1329 = vmax.f32 %v1326, %v1328
        %v1330 = vmax.f32 %v1329, 0.0
        %1331 = vst [vmem:[#allocation3] sm:$0x7] 0
        %v1332 = vpack.c.bf16 %v1330, %v1330
        %v1334 = vunpack.c.l.b16 %v1332
        %v1335 = vpack.c.b16 %v1334, %v1334
        %v1337 = vshrl.u32 %v1335, 16
        %v1339 = vrot.slane %v1337, 7
        %v1340 = vshll.u32 %v1335, 16
        %v1342 = vor.u32 %v1339, %v1340
        %v1344 = vld [vmem:[#allocation3] sm:$0x7]
        %v1345 = vsel %vm878, %v1342, %v1344
        %1346 = vst [vmem:[#allocation3] sm:$0x7] %v1345
        %v1347 = vld [vmem:[#allocation3] sm:$0x7]
        %v1348 = vld [vmem:[#allocation10] sm:$0xff]
        %v1349 = vld [vmem:[#allocation10 + $0x8] sm:$0xff]
        %v1350 = vld [vmem:[#allocation10 + $0x10] sm:$0xff]
        %v1351 = vld [vmem:[#allocation10 + $0x18] sm:$0xff]
        %v1352 = vld [vmem:[#allocation10 + $0x20] sm:$0xff]
        %v1353 = vld [vmem:[#allocation10 + $0x28] sm:$0xff]
        %v1354 = vld [vmem:[#allocation10 + $0x30] sm:$0xff]
        %v1355 = vld [vmem:[#allocation10 + $0x38] sm:$0xff]
        %v1356 = vld [vmem:[#allocation10 + $0x40] sm:$0xff]
        %v1357 = vld [vmem:[#allocation10 + $0x48] sm:$0xff]
        %v1358 = vld [vmem:[#allocation10 + $0x50] sm:$0xff]
        %v1359 = vld [vmem:[#allocation10 + $0x58] sm:$0xff]
        %v1360 = vld [vmem:[#allocation10 + $0x60] sm:$0xff]
        %v1361 = vld [vmem:[#allocation10 + $0x68] sm:$0xff]
        %v1362 = vld [vmem:[#allocation10 + $0x70] sm:$0xff]
        %v1363 = vld [vmem:[#allocation10 + $0x78] sm:$0xff]
        %s1364 = scalar_lea.vmem [#allocation10], 128
        %v1365 = vld [vmem:[%s1364] sm:$0xff]
        %v1366 = vld [vmem:[%s1364 + $0x8] sm:$0xff]
        %v1367 = vld [vmem:[%s1364 + $0x10] sm:$0xff]
        %v1368 = vld [vmem:[%s1364 + $0x18] sm:$0xff]
        %v1369 = vld [vmem:[%s1364 + $0x20] sm:$0xff]
        %v1370 = vld [vmem:[%s1364 + $0x28] sm:$0xff]
        %v1371 = vld [vmem:[%s1364 + $0x30] sm:$0xff]
        %v1372 = vld [vmem:[%s1364 + $0x38] sm:$0xff]
        %v1373 = vld [vmem:[%s1364 + $0x40] sm:$0xff]
        %v1374 = vld [vmem:[%s1364 + $0x48] sm:$0xff]
        %v1375 = vld [vmem:[%s1364 + $0x50] sm:$0xff]
        %v1376 = vld [vmem:[%s1364 + $0x58] sm:$0xff]
        %v1377 = vld [vmem:[%s1364 + $0x60] sm:$0xff]
        %v1378 = vld [vmem:[%s1364 + $0x68] sm:$0xff]
        %v1379 = vld [vmem:[%s1364 + $0x70] sm:$0xff]
        %v1380 = vld [vmem:[%s1364 + $0x78] sm:$0xff]
        %v1382 = vunpack.c.l.b16 %v1347
        %v1383 = vpack.c.b16 %v1382, %v1382
        %v1385 = vshrl.u32 %v1383, 16
        %v1387 = vshll.u32 %v1383, 16
        %v1389 = vrot.slane %v1387, 1
        %v1390 = vor.u32 %v1385, %v1389
        %v1408 = vunpack.c.l.b16 %v1365
        %v1409 = vunpack.c.h.b16 %v1365
        %v1410 = vunpack.c.l.b16 %v1366
        %v1411 = vunpack.c.h.b16 %v1366
        %v1412 = vunpack.c.l.b16 %v1367
        %v1413 = vunpack.c.h.b16 %v1367
        %v1414 = vunpack.c.l.b16 %v1368
        %v1415 = vunpack.c.h.b16 %v1368
        %v1416 = vunpack.c.l.b16 %v1369
        %v1417 = vunpack.c.h.b16 %v1369
        %v1418 = vunpack.c.l.b16 %v1370
        %v1419 = vunpack.c.h.b16 %v1370
        %v1420 = vunpack.c.l.b16 %v1371
        %v1421 = vunpack.c.h.b16 %v1371
        %v1422 = vunpack.c.l.b16 %v1372
        %v1423 = vunpack.c.h.b16 %v1372
        %v1424 = vunpack.c.l.b16 %v1373
        %v1425 = vunpack.c.h.b16 %v1373
        %v1426 = vunpack.c.l.b16 %v1374
        %v1427 = vunpack.c.h.b16 %v1374
        %v1428 = vunpack.c.l.b16 %v1375
        %v1429 = vunpack.c.h.b16 %v1375
        %v1430 = vunpack.c.l.b16 %v1376
        %v1431 = vunpack.c.h.b16 %v1376
        %v1432 = vunpack.c.l.b16 %v1377
        %v1433 = vunpack.c.h.b16 %v1377
        %v1434 = vunpack.c.l.b16 %v1378
        %v1435 = vunpack.c.h.b16 %v1378
        %v1436 = vunpack.c.l.b16 %v1379
        %v1437 = vunpack.c.h.b16 %v1379
        %v1438 = vunpack.c.l.b16 %v1380
        %v1439 = vunpack.c.h.b16 %v1380
        %v1440 = vpack.c.b16 %v1410, %v1408
        %v1441 = vpack.c.b16 %v1411, %v1409
        %v1442 = vpack.c.b16 %v1414, %v1412
        %v1443 = vpack.c.b16 %v1415, %v1413
        %v1444 = vpack.c.b16 %v1418, %v1416
        %v1445 = vpack.c.b16 %v1419, %v1417
        %v1446 = vpack.c.b16 %v1422, %v1420
        %v1447 = vpack.c.b16 %v1423, %v1421
        %v1448 = vpack.c.b16 %v1426, %v1424
        %v1449 = vpack.c.b16 %v1427, %v1425
        %v1450 = vpack.c.b16 %v1430, %v1428
        %v1451 = vpack.c.b16 %v1431, %v1429
        %v1452 = vpack.c.b16 %v1434, %v1432
        %v1453 = vpack.c.b16 %v1435, %v1433
        %v1454 = vpack.c.b16 %v1438, %v1436
        %v1455 = vpack.c.b16 %v1439, %v1437
        %1472 = vmatprep.subr.bf16.mxu0 %v1441
        %1473 = vmatpush1.bf16.msra.mxu0 %v1440
        %1474 = vmatprep.subr.bf16.mxu0 %v1443
        %1475 = vmatpush1.bf16.msra.mxu0 %v1442
        %1476 = vmatprep.subr.bf16.mxu0 %v1445
        %1477 = vmatpush1.bf16.msra.mxu0 %v1444
        %1478 = vmatprep.subr.bf16.mxu0 %v1447
        %1479 = vmatpush1.bf16.msra.mxu0 %v1446
        %1480 = vmatprep.subr.bf16.mxu0 %v1449
        %1481 = vmatpush1.bf16.msra.mxu0 %v1448
        %1482 = vmatprep.subr.bf16.mxu0 %v1451
        %1483 = vmatpush1.bf16.msra.mxu0 %v1450
        %1484 = vmatprep.subr.bf16.mxu0 %v1453
        %1485 = vmatpush1.bf16.msra.mxu0 %v1452
        %1486 = vmatprep.subr.bf16.mxu0 %v1455
        %1487 = vmatpush1.bf16.msra.mxu0 %v1454
        %1488 = vmatprep.subr.bf16.mxu0 0
        %1489 = vmatpush1.bf16.msra.mxu0 0
        %1490 = vmatprep.subr.bf16.mxu0 0
        %1491 = vmatpush1.bf16.msra.mxu0 0
        %1492 = vmatprep.subr.bf16.mxu0 0
        %1493 = vmatpush1.bf16.msra.mxu0 0
        %1494 = vmatprep.subr.bf16.mxu0 0
        %1495 = vmatpush1.bf16.msra.mxu0 0
        %1496 = vmatprep.subr.bf16.mxu0 0
        %1497 = vmatpush1.bf16.msra.mxu0 0
        %1498 = vmatprep.subr.bf16.mxu0 0
        %1499 = vmatpush1.bf16.msra.mxu0 0
        %1500 = vmatprep.subr.bf16.mxu0 0
        %1501 = vmatpush1.bf16.msra.mxu0 0
        %1502 = vmatprep.subr.bf16.mxu0 0
        %1503 = vmatpush1.bf16.msra.mxu0 0
        %1504 = vmatprep.mubr.bf16.mxu0 0
        %1505 = vmatmul.mubr.bf16.gmra.mrb[0].mxu0 %v1390
        %v1506 = vpop.f32.mrb[0].mxu0
        %v1507 = vadd.f32 0.0, %v1506
        %v1508 = vpop.f32.mrb[0].mxu0
        %v1509 = vadd.f32 0.0, %v1508
        %v1510 = vpop.f32.mrb[0].mxu0
        %v1511 = vpop.f32.mrb[0].mxu0
        %1512 = vdwg.mxu0
        %v1529 = vunpack.c.l.b16 %v1348
        %v1530 = vunpack.c.h.b16 %v1348
        %v1531 = vunpack.c.l.b16 %v1349
        %v1532 = vunpack.c.h.b16 %v1349
        %v1533 = vunpack.c.l.b16 %v1350
        %v1534 = vunpack.c.h.b16 %v1350
        %v1535 = vunpack.c.l.b16 %v1351
        %v1536 = vunpack.c.h.b16 %v1351
        %v1537 = vunpack.c.l.b16 %v1352
        %v1538 = vunpack.c.h.b16 %v1352
        %v1539 = vunpack.c.l.b16 %v1353
        %v1540 = vunpack.c.h.b16 %v1353
        %v1541 = vunpack.c.l.b16 %v1354
        %v1542 = vunpack.c.h.b16 %v1354
        %v1543 = vunpack.c.l.b16 %v1355
        %v1544 = vunpack.c.h.b16 %v1355
        %v1545 = vunpack.c.l.b16 %v1356
        %v1546 = vunpack.c.h.b16 %v1356
        %v1547 = vunpack.c.l.b16 %v1357
        %v1548 = vunpack.c.h.b16 %v1357
        %v1549 = vunpack.c.l.b16 %v1358
        %v1550 = vunpack.c.h.b16 %v1358
        %v1551 = vunpack.c.l.b16 %v1359
        %v1552 = vunpack.c.h.b16 %v1359
        %v1553 = vunpack.c.l.b16 %v1360
        %v1554 = vunpack.c.h.b16 %v1360
        %v1555 = vunpack.c.l.b16 %v1361
        %v1556 = vunpack.c.h.b16 %v1361
        %v1557 = vunpack.c.l.b16 %v1362
        %v1558 = vunpack.c.h.b16 %v1362
        %v1559 = vunpack.c.l.b16 %v1363
        %v1560 = vunpack.c.h.b16 %v1363
        %v1561 = vpack.c.b16 %v1531, %v1529
        %v1562 = vpack.c.b16 %v1532, %v1530
        %v1563 = vpack.c.b16 %v1535, %v1533
        %v1564 = vpack.c.b16 %v1536, %v1534
        %v1565 = vpack.c.b16 %v1539, %v1537
        %v1566 = vpack.c.b16 %v1540, %v1538
        %v1567 = vpack.c.b16 %v1543, %v1541
        %v1568 = vpack.c.b16 %v1544, %v1542
        %v1569 = vpack.c.b16 %v1547, %v1545
        %v1570 = vpack.c.b16 %v1548, %v1546
        %v1571 = vpack.c.b16 %v1551, %v1549
        %v1572 = vpack.c.b16 %v1552, %v1550
        %v1573 = vpack.c.b16 %v1555, %v1553
        %v1574 = vpack.c.b16 %v1556, %v1554
        %v1575 = vpack.c.b16 %v1559, %v1557
        %v1576 = vpack.c.b16 %v1560, %v1558
        %1593 = vmatprep.subr.bf16.mxu0 %v1562
        %1594 = vmatpush1.bf16.msra.mxu0 %v1561
        %1595 = vmatprep.subr.bf16.mxu0 %v1564
        %1596 = vmatpush1.bf16.msra.mxu0 %v1563
        %1597 = vmatprep.subr.bf16.mxu0 %v1566
        %1598 = vmatpush1.bf16.msra.mxu0 %v1565
        %1599 = vmatprep.subr.bf16.mxu0 %v1568
        %1600 = vmatpush1.bf16.msra.mxu0 %v1567
        %1601 = vmatprep.subr.bf16.mxu0 %v1570
        %1602 = vmatpush1.bf16.msra.mxu0 %v1569
        %1603 = vmatprep.subr.bf16.mxu0 %v1572
        %1604 = vmatpush1.bf16.msra.mxu0 %v1571
        %1605 = vmatprep.subr.bf16.mxu0 %v1574
        %1606 = vmatpush1.bf16.msra.mxu0 %v1573
        %1607 = vmatprep.subr.bf16.mxu0 %v1576
        %1608 = vmatpush1.bf16.msra.mxu0 %v1575
        %1609 = vmatprep.subr.bf16.mxu0 0
        %1610 = vmatpush1.bf16.msra.mxu0 0
        %1611 = vmatprep.subr.bf16.mxu0 0
        %1612 = vmatpush1.bf16.msra.mxu0 0
        %1613 = vmatprep.subr.bf16.mxu0 0
        %1614 = vmatpush1.bf16.msra.mxu0 0
        %1615 = vmatprep.subr.bf16.mxu0 0
        %1616 = vmatpush1.bf16.msra.mxu0 0
        %1617 = vmatprep.subr.bf16.mxu0 0
        %1618 = vmatpush1.bf16.msra.mxu0 0
        %1619 = vmatprep.subr.bf16.mxu0 0
        %1620 = vmatpush1.bf16.msra.mxu0 0
        %1621 = vmatprep.subr.bf16.mxu0 0
        %1622 = vmatpush1.bf16.msra.mxu0 0
        %1623 = vmatprep.subr.bf16.mxu0 0
        %1624 = vmatpush1.bf16.msra.mxu0 0
        %1625 = vmatprep.mubr.bf16.mxu0 0
        %1626 = vmatmul.mubr.bf16.gmra.mrb[0].mxu0 %v1347
        %v1627 = vpop.f32.mrb[0].mxu0
        %v1628 = vadd.f32 %v1507, %v1627
        %v1629 = vpop.f32.mrb[0].mxu0
        %v1630 = vadd.f32 %v1509, %v1629
        %v1631 = vpop.f32.mrb[0].mxu0
        %v1632 = vpop.f32.mrb[0].mxu0
        %1633 = vdwg.mxu0
        %s1634 = scalar_lea.vmem [#allocation10], 256
        %v1635 = vld [vmem:[%s1634] sm:$0xff]
        %v1636 = vld [vmem:[%s1634 + $0x8] sm:$0xff]
        %v1637 = vld [vmem:[%s1634 + $0x10] sm:$0xff]
        %v1638 = vld [vmem:[%s1634 + $0x18] sm:$0xff]
        %v1639 = vld [vmem:[%s1634 + $0x20] sm:$0xff]
        %v1640 = vld [vmem:[%s1634 + $0x28] sm:$0xff]
        %v1641 = vld [vmem:[%s1634 + $0x30] sm:$0xff]
        %v1642 = vld [vmem:[%s1634 + $0x38] sm:$0xff]
        %v1643 = vld [vmem:[%s1634 + $0x40] sm:$0xff]
        %v1644 = vld [vmem:[%s1634 + $0x48] sm:$0xff]
        %v1645 = vld [vmem:[%s1634 + $0x50] sm:$0xff]
        %v1646 = vld [vmem:[%s1634 + $0x58] sm:$0xff]
        %v1647 = vld [vmem:[%s1634 + $0x60] sm:$0xff]
        %v1648 = vld [vmem:[%s1634 + $0x68] sm:$0xff]
        %v1649 = vld [vmem:[%s1634 + $0x70] sm:$0xff]
        %v1650 = vld [vmem:[%s1634 + $0x78] sm:$0xff]
        %v1651 = vrot.slane %v1383, 1
        %v1669 = vunpack.c.l.b16 %v1635
        %v1670 = vunpack.c.h.b16 %v1635
        %v1671 = vunpack.c.l.b16 %v1636
        %v1672 = vunpack.c.h.b16 %v1636
        %v1673 = vunpack.c.l.b16 %v1637
        %v1674 = vunpack.c.h.b16 %v1637
        %v1675 = vunpack.c.l.b16 %v1638
        %v1676 = vunpack.c.h.b16 %v1638
        %v1677 = vunpack.c.l.b16 %v1639
        %v1678 = vunpack.c.h.b16 %v1639
        %v1679 = vunpack.c.l.b16 %v1640
        %v1680 = vunpack.c.h.b16 %v1640
        %v1681 = vunpack.c.l.b16 %v1641
        %v1682 = vunpack.c.h.b16 %v1641
        %v1683 = vunpack.c.l.b16 %v1642
        %v1684 = vunpack.c.h.b16 %v1642
        %v1685 = vunpack.c.l.b16 %v1643
        %v1686 = vunpack.c.h.b16 %v1643
        %v1687 = vunpack.c.l.b16 %v1644
        %v1688 = vunpack.c.h.b16 %v1644
        %v1689 = vunpack.c.l.b16 %v1645
        %v1690 = vunpack.c.h.b16 %v1645
        %v1691 = vunpack.c.l.b16 %v1646
        %v1692 = vunpack.c.h.b16 %v1646
        %v1693 = vunpack.c.l.b16 %v1647
        %v1694 = vunpack.c.h.b16 %v1647
        %v1695 = vunpack.c.l.b16 %v1648
        %v1696 = vunpack.c.h.b16 %v1648
        %v1697 = vunpack.c.l.b16 %v1649
        %v1698 = vunpack.c.h.b16 %v1649
        %v1699 = vunpack.c.l.b16 %v1650
        %v1700 = vunpack.c.h.b16 %v1650
        %v1701 = vpack.c.b16 %v1671, %v1669
        %v1702 = vpack.c.b16 %v1672, %v1670
        %v1703 = vpack.c.b16 %v1675, %v1673
        %v1704 = vpack.c.b16 %v1676, %v1674
        %v1705 = vpack.c.b16 %v1679, %v1677
        %v1706 = vpack.c.b16 %v1680, %v1678
        %v1707 = vpack.c.b16 %v1683, %v1681
        %v1708 = vpack.c.b16 %v1684, %v1682
        %v1709 = vpack.c.b16 %v1687, %v1685
        %v1710 = vpack.c.b16 %v1688, %v1686
        %v1711 = vpack.c.b16 %v1691, %v1689
        %v1712 = vpack.c.b16 %v1692, %v1690
        %v1713 = vpack.c.b16 %v1695, %v1693
        %v1714 = vpack.c.b16 %v1696, %v1694
        %v1715 = vpack.c.b16 %v1699, %v1697
        %v1716 = vpack.c.b16 %v1700, %v1698
        %1733 = vmatprep.subr.bf16.mxu0 %v1702
        %1734 = vmatpush1.bf16.msra.mxu0 %v1701
        %1735 = vmatprep.subr.bf16.mxu0 %v1704
        %1736 = vmatpush1.bf16.msra.mxu0 %v1703
        %1737 = vmatprep.subr.bf16.mxu0 %v1706
        %1738 = vmatpush1.bf16.msra.mxu0 %v1705
        %1739 = vmatprep.subr.bf16.mxu0 %v1708
        %1740 = vmatpush1.bf16.msra.mxu0 %v1707
        %1741 = vmatprep.subr.bf16.mxu0 %v1710
        %1742 = vmatpush1.bf16.msra.mxu0 %v1709
        %1743 = vmatprep.subr.bf16.mxu0 %v1712
        %1744 = vmatpush1.bf16.msra.mxu0 %v1711
        %1745 = vmatprep.subr.bf16.mxu0 %v1714
        %1746 = vmatpush1.bf16.msra.mxu0 %v1713
        %1747 = vmatprep.subr.bf16.mxu0 %v1716
        %1748 = vmatpush1.bf16.msra.mxu0 %v1715
        %1749 = vmatprep.subr.bf16.mxu0 0
        %1750 = vmatpush1.bf16.msra.mxu0 0
        %1751 = vmatprep.subr.bf16.mxu0 0
        %1752 = vmatpush1.bf16.msra.mxu0 0
        %1753 = vmatprep.subr.bf16.mxu0 0
        %1754 = vmatpush1.bf16.msra.mxu0 0
        %1755 = vmatprep.subr.bf16.mxu0 0
        %1756 = vmatpush1.bf16.msra.mxu0 0
        %1757 = vmatprep.subr.bf16.mxu0 0
        %1758 = vmatpush1.bf16.msra.mxu0 0
        %1759 = vmatprep.subr.bf16.mxu0 0
        %1760 = vmatpush1.bf16.msra.mxu0 0
        %1761 = vmatprep.subr.bf16.mxu0 0
        %1762 = vmatpush1.bf16.msra.mxu0 0
        %1763 = vmatprep.subr.bf16.mxu0 0
        %1764 = vmatpush1.bf16.msra.mxu0 0
        %1765 = vmatprep.mubr.bf16.mxu0 0
        %1766 = vmatmul.mubr.bf16.gmra.mrb[0].mxu0 %v1651
        %v1767 = vpop.f32.mrb[0].mxu0
        %v1768 = vadd.f32 0.0, %v1767
        %v1769 = vpop.f32.mrb[0].mxu0
        %v1770 = vadd.f32 0.0, %v1769
        %v1771 = vpop.f32.mrb[0].mxu0
        %v1772 = vpop.f32.mrb[0].mxu0
        %1773 = vdwg.mxu0
        %v1774 = vadd.f32 %v1628, %v1768
        %v1775 = vadd.f32 %v1630, %v1770
        %v1776 = vld [vmem:[%s8] sm:$0x1]
        %v1777 = vld [vmem:[%s9] sm:$0x1]
        %v1779 = vlaneseq
        %v1780 = vshrl.u32 %v1779, 7
        %v1781 = vsub.s32 0, %v1780
        %v1782 = vrot.slane %v1776, %v1781
        %v1784 = vmul.f32 %v1774, %v1782
        %v1786 = vlaneseq
        %v1787 = vshrl.u32 %v1786, 7
        %v1788 = vsub.s32 0, %v1787
        %v1789 = vrot.slane %v1777, %v1788
        %v1791 = vadd.f32 %v1784, %v1789
        %v1792 = vmul.f32 %v1775, %v1782
        %v1793 = vadd.f32 %v1792, %v1789
        %v1794 = vmax.f32 %v1791, %v1793
        %v1795 = vmax.f32 %v1794, 0.0
        %1796 = vst [vmem:[#allocation4] sm:$0x7] 0
        %v1797 = vpack.c.bf16 %v1795, %v1795
        %v1799 = vunpack.c.l.b16 %v1797
        %v1800 = vpack.c.b16 %v1799, %v1799
        %v1802 = vshrl.u32 %v1800, 16
        %v1804 = vrot.slane %v1802, 7
        %v1805 = vshll.u32 %v1800, 16
        %v1807 = vor.u32 %v1804, %v1805
        %v1809 = vld [vmem:[#allocation4] sm:$0x7]
        %v1810 = vsel %vm878, %v1807, %v1809
        %1811 = vst [vmem:[#allocation4] sm:$0x7] %v1810
        %v1812 = vld [vmem:[#allocation4] sm:$0x7]
        %v1813 = vld [vmem:[#allocation11] sm:$0xff]
        %v1814 = vld [vmem:[#allocation11 + $0x8] sm:$0xff]
        %v1815 = vld [vmem:[#allocation11 + $0x10] sm:$0xff]
        %v1816 = vld [vmem:[#allocation11 + $0x18] sm:$0xff]
        %v1817 = vld [vmem:[#allocation11 + $0x20] sm:$0xff]
        %v1818 = vld [vmem:[#allocation11 + $0x28] sm:$0xff]
        %v1819 = vld [vmem:[#allocation11 + $0x30] sm:$0xff]
        %v1820 = vld [vmem:[#allocation11 + $0x38] sm:$0xff]
        %v1821 = vld [vmem:[#allocation11 + $0x40] sm:$0xff]
        %v1822 = vld [vmem:[#allocation11 + $0x48] sm:$0xff]
        %v1823 = vld [vmem:[#allocation11 + $0x50] sm:$0xff]
        %v1824 = vld [vmem:[#allocation11 + $0x58] sm:$0xff]
        %v1825 = vld [vmem:[#allocation11 + $0x60] sm:$0xff]
        %v1826 = vld [vmem:[#allocation11 + $0x68] sm:$0xff]
        %v1827 = vld [vmem:[#allocation11 + $0x70] sm:$0xff]
        %v1828 = vld [vmem:[#allocation11 + $0x78] sm:$0xff]
        %s1829 = scalar_lea.vmem [#allocation11], 128
        %v1830 = vld [vmem:[%s1829] sm:$0xff]
        %v1831 = vld [vmem:[%s1829 + $0x8] sm:$0xff]
        %v1832 = vld [vmem:[%s1829 + $0x10] sm:$0xff]
        %v1833 = vld [vmem:[%s1829 + $0x18] sm:$0xff]
        %v1834 = vld [vmem:[%s1829 + $0x20] sm:$0xff]
        %v1835 = vld [vmem:[%s1829 + $0x28] sm:$0xff]
        %v1836 = vld [vmem:[%s1829 + $0x30] sm:$0xff]
        %v1837 = vld [vmem:[%s1829 + $0x38] sm:$0xff]
        %v1838 = vld [vmem:[%s1829 + $0x40] sm:$0xff]
        %v1839 = vld [vmem:[%s1829 + $0x48] sm:$0xff]
        %v1840 = vld [vmem:[%s1829 + $0x50] sm:$0xff]
        %v1841 = vld [vmem:[%s1829 + $0x58] sm:$0xff]
        %v1842 = vld [vmem:[%s1829 + $0x60] sm:$0xff]
        %v1843 = vld [vmem:[%s1829 + $0x68] sm:$0xff]
        %v1844 = vld [vmem:[%s1829 + $0x70] sm:$0xff]
        %v1845 = vld [vmem:[%s1829 + $0x78] sm:$0xff]
        %v1847 = vunpack.c.l.b16 %v1812
        %v1848 = vpack.c.b16 %v1847, %v1847
        %v1850 = vshrl.u32 %v1848, 16
        %v1852 = vshll.u32 %v1848, 16
        %v1854 = vrot.slane %v1852, 1
        %v1855 = vor.u32 %v1850, %v1854
        %v1873 = vunpack.c.l.b16 %v1830
        %v1874 = vunpack.c.h.b16 %v1830
        %v1875 = vunpack.c.l.b16 %v1831
        %v1876 = vunpack.c.h.b16 %v1831
        %v1877 = vunpack.c.l.b16 %v1832
        %v1878 = vunpack.c.h.b16 %v1832
        %v1879 = vunpack.c.l.b16 %v1833
        %v1880 = vunpack.c.h.b16 %v1833
        %v1881 = vunpack.c.l.b16 %v1834
        %v1882 = vunpack.c.h.b16 %v1834
        %v1883 = vunpack.c.l.b16 %v1835
        %v1884 = vunpack.c.h.b16 %v1835
        %v1885 = vunpack.c.l.b16 %v1836
        %v1886 = vunpack.c.h.b16 %v1836
        %v1887 = vunpack.c.l.b16 %v1837
        %v1888 = vunpack.c.h.b16 %v1837
        %v1889 = vunpack.c.l.b16 %v1838
        %v1890 = vunpack.c.h.b16 %v1838
        %v1891 = vunpack.c.l.b16 %v1839
        %v1892 = vunpack.c.h.b16 %v1839
        %v1893 = vunpack.c.l.b16 %v1840
        %v1894 = vunpack.c.h.b16 %v1840
        %v1895 = vunpack.c.l.b16 %v1841
        %v1896 = vunpack.c.h.b16 %v1841
        %v1897 = vunpack.c.l.b16 %v1842
        %v1898 = vunpack.c.h.b16 %v1842
        %v1899 = vunpack.c.l.b16 %v1843
        %v1900 = vunpack.c.h.b16 %v1843
        %v1901 = vunpack.c.l.b16 %v1844
        %v1902 = vunpack.c.h.b16 %v1844
        %v1903 = vunpack.c.l.b16 %v1845
        %v1904 = vunpack.c.h.b16 %v1845
        %v1905 = vpack.c.b16 %v1875, %v1873
        %v1906 = vpack.c.b16 %v1876, %v1874
        %v1907 = vpack.c.b16 %v1879, %v1877
        %v1908 = vpack.c.b16 %v1880, %v1878
        %v1909 = vpack.c.b16 %v1883, %v1881
        %v1910 = vpack.c.b16 %v1884, %v1882
        %v1911 = vpack.c.b16 %v1887, %v1885
        %v1912 = vpack.c.b16 %v1888, %v1886
        %v1913 = vpack.c.b16 %v1891, %v1889
        %v1914 = vpack.c.b16 %v1892, %v1890
        %v1915 = vpack.c.b16 %v1895, %v1893
        %v1916 = vpack.c.b16 %v1896, %v1894
        %v1917 = vpack.c.b16 %v1899, %v1897
        %v1918 = vpack.c.b16 %v1900, %v1898
        %v1919 = vpack.c.b16 %v1903, %v1901
        %v1920 = vpack.c.b16 %v1904, %v1902
        %1937 = vmatprep.subr.bf16.mxu0 %v1906
        %1938 = vmatpush1.bf16.msra.mxu0 %v1905
        %1939 = vmatprep.subr.bf16.mxu0 %v1908
        %1940 = vmatpush1.bf16.msra.mxu0 %v1907
        %1941 = vmatprep.subr.bf16.mxu0 %v1910
        %1942 = vmatpush1.bf16.msra.mxu0 %v1909
        %1943 = vmatprep.subr.bf16.mxu0 %v1912
        %1944 = vmatpush1.bf16.msra.mxu0 %v1911
        %1945 = vmatprep.subr.bf16.mxu0 %v1914
        %1946 = vmatpush1.bf16.msra.mxu0 %v1913
        %1947 = vmatprep.subr.bf16.mxu0 %v1916
        %1948 = vmatpush1.bf16.msra.mxu0 %v1915
        %1949 = vmatprep.subr.bf16.mxu0 %v1918
        %1950 = vmatpush1.bf16.msra.mxu0 %v1917
        %1951 = vmatprep.subr.bf16.mxu0 %v1920
        %1952 = vmatpush1.bf16.msra.mxu0 %v1919
        %1953 = vmatprep.subr.bf16.mxu0 0
        %1954 = vmatpush1.bf16.msra.mxu0 0
        %1955 = vmatprep.subr.bf16.mxu0 0
        %1956 = vmatpush1.bf16.msra.mxu0 0
        %1957 = vmatprep.subr.bf16.mxu0 0
        %1958 = vmatpush1.bf16.msra.mxu0 0
        %1959 = vmatprep.subr.bf16.mxu0 0
        %1960 = vmatpush1.bf16.msra.mxu0 0
        %1961 = vmatprep.subr.bf16.mxu0 0
        %1962 = vmatpush1.bf16.msra.mxu0 0
        %1963 = vmatprep.subr.bf16.mxu0 0
        %1964 = vmatpush1.bf16.msra.mxu0 0
        %1965 = vmatprep.subr.bf16.mxu0 0
        %1966 = vmatpush1.bf16.msra.mxu0 0
        %1967 = vmatprep.subr.bf16.mxu0 0
        %1968 = vmatpush1.bf16.msra.mxu0 0
        %1969 = vmatprep.mubr.bf16.mxu0 0
        %1970 = vmatmul.mubr.bf16.gmra.mrb[0].mxu0 %v1855
        %v1971 = vpop.f32.mrb[0].mxu0
        %v1972 = vadd.f32 0.0, %v1971
        %v1973 = vpop.f32.mrb[0].mxu0
        %v1974 = vadd.f32 0.0, %v1973
        %v1975 = vpop.f32.mrb[0].mxu0
        %v1976 = vpop.f32.mrb[0].mxu0
        %1977 = vdwg.mxu0
        %v1994 = vunpack.c.l.b16 %v1813
        %v1995 = vunpack.c.h.b16 %v1813
        %v1996 = vunpack.c.l.b16 %v1814
        %v1997 = vunpack.c.h.b16 %v1814
        %v1998 = vunpack.c.l.b16 %v1815
        %v1999 = vunpack.c.h.b16 %v1815
        %v2000 = vunpack.c.l.b16 %v1816
        %v2001 = vunpack.c.h.b16 %v1816
        %v2002 = vunpack.c.l.b16 %v1817
        %v2003 = vunpack.c.h.b16 %v1817
        %v2004 = vunpack.c.l.b16 %v1818
        %v2005 = vunpack.c.h.b16 %v1818
        %v2006 = vunpack.c.l.b16 %v1819
        %v2007 = vunpack.c.h.b16 %v1819
        %v2008 = vunpack.c.l.b16 %v1820
        %v2009 = vunpack.c.h.b16 %v1820
        %v2010 = vunpack.c.l.b16 %v1821
        %v2011 = vunpack.c.h.b16 %v1821
        %v2012 = vunpack.c.l.b16 %v1822
        %v2013 = vunpack.c.h.b16 %v1822
        %v2014 = vunpack.c.l.b16 %v1823
        %v2015 = vunpack.c.h.b16 %v1823
        %v2016 = vunpack.c.l.b16 %v1824
        %v2017 = vunpack.c.h.b16 %v1824
        %v2018 = vunpack.c.l.b16 %v1825
        %v2019 = vunpack.c.h.b16 %v1825
        %v2020 = vunpack.c.l.b16 %v1826
        %v2021 = vunpack.c.h.b16 %v1826
        %v2022 = vunpack.c.l.b16 %v1827
        %v2023 = vunpack.c.h.b16 %v1827
        %v2024 = vunpack.c.l.b16 %v1828
        %v2025 = vunpack.c.h.b16 %v1828
        %v2026 = vpack.c.b16 %v1996, %v1994
        %v2027 = vpack.c.b16 %v1997, %v1995
        %v2028 = vpack.c.b16 %v2000, %v1998
        %v2029 = vpack.c.b16 %v2001, %v1999
        %v2030 = vpack.c.b16 %v2004, %v2002
        %v2031 = vpack.c.b16 %v2005, %v2003
        %v2032 = vpack.c.b16 %v2008, %v2006
        %v2033 = vpack.c.b16 %v2009, %v2007
        %v2034 = vpack.c.b16 %v2012, %v2010
        %v2035 = vpack.c.b16 %v2013, %v2011
        %v2036 = vpack.c.b16 %v2016, %v2014
        %v2037 = vpack.c.b16 %v2017, %v2015
        %v2038 = vpack.c.b16 %v2020, %v2018
        %v2039 = vpack.c.b16 %v2021, %v2019
        %v2040 = vpack.c.b16 %v2024, %v2022
        %v2041 = vpack.c.b16 %v2025, %v2023
        %2058 = vmatprep.subr.bf16.mxu0 %v2027
        %2059 = vmatpush1.bf16.msra.mxu0 %v2026
        %2060 = vmatprep.subr.bf16.mxu0 %v2029
        %2061 = vmatpush1.bf16.msra.mxu0 %v2028
        %2062 = vmatprep.subr.bf16.mxu0 %v2031
        %2063 = vmatpush1.bf16.msra.mxu0 %v2030
        %2064 = vmatprep.subr.bf16.mxu0 %v2033
        %2065 = vmatpush1.bf16.msra.mxu0 %v2032
        %2066 = vmatprep.subr.bf16.mxu0 %v2035
        %2067 = vmatpush1.bf16.msra.mxu0 %v2034
        %2068 = vmatprep.subr.bf16.mxu0 %v2037
        %2069 = vmatpush1.bf16.msra.mxu0 %v2036
        %2070 = vmatprep.subr.bf16.mxu0 %v2039
        %2071 = vmatpush1.bf16.msra.mxu0 %v2038
        %2072 = vmatprep.subr.bf16.mxu0 %v2041
        %2073 = vmatpush1.bf16.msra.mxu0 %v2040
        %2074 = vmatprep.subr.bf16.mxu0 0
        %2075 = vmatpush1.bf16.msra.mxu0 0
        %2076 = vmatprep.subr.bf16.mxu0 0
        %2077 = vmatpush1.bf16.msra.mxu0 0
        %2078 = vmatprep.subr.bf16.mxu0 0
        %2079 = vmatpush1.bf16.msra.mxu0 0
        %2080 = vmatprep.subr.bf16.mxu0 0
        %2081 = vmatpush1.bf16.msra.mxu0 0
        %2082 = vmatprep.subr.bf16.mxu0 0
        %2083 = vmatpush1.bf16.msra.mxu0 0
        %2084 = vmatprep.subr.bf16.mxu0 0
        %2085 = vmatpush1.bf16.msra.mxu0 0
        %2086 = vmatprep.subr.bf16.mxu0 0
        %2087 = vmatpush1.bf16.msra.mxu0 0
        %2088 = vmatprep.subr.bf16.mxu0 0
        %2089 = vmatpush1.bf16.msra.mxu0 0
        %2090 = vmatprep.mubr.bf16.mxu0 0
        %2091 = vmatmul.mubr.bf16.gmra.mrb[0].mxu0 %v1812
        %v2092 = vpop.f32.mrb[0].mxu0
        %v2093 = vadd.f32 %v1972, %v2092
        %v2094 = vpop.f32.mrb[0].mxu0
        %v2095 = vadd.f32 %v1974, %v2094
        %v2096 = vpop.f32.mrb[0].mxu0
        %v2097 = vpop.f32.mrb[0].mxu0
        %2098 = vdwg.mxu0
        %s2099 = scalar_lea.vmem [#allocation11], 256
        %v2100 = vld [vmem:[%s2099] sm:$0xff]
        %v2101 = vld [vmem:[%s2099 + $0x8] sm:$0xff]
        %v2102 = vld [vmem:[%s2099 + $0x10] sm:$0xff]
        %v2103 = vld [vmem:[%s2099 + $0x18] sm:$0xff]
        %v2104 = vld [vmem:[%s2099 + $0x20] sm:$0xff]
        %v2105 = vld [vmem:[%s2099 + $0x28] sm:$0xff]
        %v2106 = vld [vmem:[%s2099 + $0x30] sm:$0xff]
        %v2107 = vld [vmem:[%s2099 + $0x38] sm:$0xff]
        %v2108 = vld [vmem:[%s2099 + $0x40] sm:$0xff]
        %v2109 = vld [vmem:[%s2099 + $0x48] sm:$0xff]
        %v2110 = vld [vmem:[%s2099 + $0x50] sm:$0xff]
        %v2111 = vld [vmem:[%s2099 + $0x58] sm:$0xff]
        %v2112 = vld [vmem:[%s2099 + $0x60] sm:$0xff]
        %v2113 = vld [vmem:[%s2099 + $0x68] sm:$0xff]
        %v2114 = vld [vmem:[%s2099 + $0x70] sm:$0xff]
        %v2115 = vld [vmem:[%s2099 + $0x78] sm:$0xff]
        %v2116 = vrot.slane %v1848, 1
        %v2134 = vunpack.c.l.b16 %v2100
        %v2135 = vunpack.c.h.b16 %v2100
        %v2136 = vunpack.c.l.b16 %v2101
        %v2137 = vunpack.c.h.b16 %v2101
        %v2138 = vunpack.c.l.b16 %v2102
        %v2139 = vunpack.c.h.b16 %v2102
        %v2140 = vunpack.c.l.b16 %v2103
        %v2141 = vunpack.c.h.b16 %v2103
        %v2142 = vunpack.c.l.b16 %v2104
        %v2143 = vunpack.c.h.b16 %v2104
        %v2144 = vunpack.c.l.b16 %v2105
        %v2145 = vunpack.c.h.b16 %v2105
        %v2146 = vunpack.c.l.b16 %v2106
        %v2147 = vunpack.c.h.b16 %v2106
        %v2148 = vunpack.c.l.b16 %v2107
        %v2149 = vunpack.c.h.b16 %v2107
        %v2150 = vunpack.c.l.b16 %v2108
        %v2151 = vunpack.c.h.b16 %v2108
        %v2152 = vunpack.c.l.b16 %v2109
        %v2153 = vunpack.c.h.b16 %v2109
        %v2154 = vunpack.c.l.b16 %v2110
        %v2155 = vunpack.c.h.b16 %v2110
        %v2156 = vunpack.c.l.b16 %v2111
        %v2157 = vunpack.c.h.b16 %v2111
        %v2158 = vunpack.c.l.b16 %v2112
        %v2159 = vunpack.c.h.b16 %v2112
        %v2160 = vunpack.c.l.b16 %v2113
        %v2161 = vunpack.c.h.b16 %v2113
        %v2162 = vunpack.c.l.b16 %v2114
        %v2163 = vunpack.c.h.b16 %v2114
        %v2164 = vunpack.c.l.b16 %v2115
        %v2165 = vunpack.c.h.b16 %v2115
        %v2166 = vpack.c.b16 %v2136, %v2134
        %v2167 = vpack.c.b16 %v2137, %v2135
        %v2168 = vpack.c.b16 %v2140, %v2138
        %v2169 = vpack.c.b16 %v2141, %v2139
        %v2170 = vpack.c.b16 %v2144, %v2142
        %v2171 = vpack.c.b16 %v2145, %v2143
        %v2172 = vpack.c.b16 %v2148, %v2146
        %v2173 = vpack.c.b16 %v2149, %v2147
        %v2174 = vpack.c.b16 %v2152, %v2150
        %v2175 = vpack.c.b16 %v2153, %v2151
        %v2176 = vpack.c.b16 %v2156, %v2154
        %v2177 = vpack.c.b16 %v2157, %v2155
        %v2178 = vpack.c.b16 %v2160, %v2158
        %v2179 = vpack.c.b16 %v2161, %v2159
        %v2180 = vpack.c.b16 %v2164, %v2162
        %v2181 = vpack.c.b16 %v2165, %v2163
        %2198 = vmatprep.subr.bf16.mxu0 %v2167
        %2199 = vmatpush1.bf16.msra.mxu0 %v2166
        %2200 = vmatprep.subr.bf16.mxu0 %v2169
        %2201 = vmatpush1.bf16.msra.mxu0 %v2168
        %2202 = vmatprep.subr.bf16.mxu0 %v2171
        %2203 = vmatpush1.bf16.msra.mxu0 %v2170
        %2204 = vmatprep.subr.bf16.mxu0 %v2173
        %2205 = vmatpush1.bf16.msra.mxu0 %v2172
        %2206 = vmatprep.subr.bf16.mxu0 %v2175
        %2207 = vmatpush1.bf16.msra.mxu0 %v2174
        %2208 = vmatprep.subr.bf16.mxu0 %v2177
        %2209 = vmatpush1.bf16.msra.mxu0 %v2176
        %2210 = vmatprep.subr.bf16.mxu0 %v2179
        %2211 = vmatpush1.bf16.msra.mxu0 %v2178
        %2212 = vmatprep.subr.bf16.mxu0 %v2181
        %2213 = vmatpush1.bf16.msra.mxu0 %v2180
        %2214 = vmatprep.subr.bf16.mxu0 0
        %2215 = vmatpush1.bf16.msra.mxu0 0
        %2216 = vmatprep.subr.bf16.mxu0 0
        %2217 = vmatpush1.bf16.msra.mxu0 0
        %2218 = vmatprep.subr.bf16.mxu0 0
        %2219 = vmatpush1.bf16.msra.mxu0 0
        %2220 = vmatprep.subr.bf16.mxu0 0
        %2221 = vmatpush1.bf16.msra.mxu0 0
        %2222 = vmatprep.subr.bf16.mxu0 0
        %2223 = vmatpush1.bf16.msra.mxu0 0
        %2224 = vmatprep.subr.bf16.mxu0 0
        %2225 = vmatpush1.bf16.msra.mxu0 0
        %2226 = vmatprep.subr.bf16.mxu0 0
        %2227 = vmatpush1.bf16.msra.mxu0 0
        %2228 = vmatprep.subr.bf16.mxu0 0
        %2229 = vmatpush1.bf16.msra.mxu0 0
        %2230 = vmatprep.mubr.bf16.mxu0 0
        %2231 = vmatmul.mubr.bf16.gmra.mrb[0].mxu0 %v2116
        %v2232 = vpop.f32.mrb[0].mxu0
        %v2233 = vadd.f32 0.0, %v2232
        %v2234 = vpop.f32.mrb[0].mxu0
        %v2235 = vadd.f32 0.0, %v2234
        %v2236 = vpop.f32.mrb[0].mxu0
        %v2237 = vpop.f32.mrb[0].mxu0
        %2238 = vdwg.mxu0
        %v2239 = vadd.f32 %v2093, %v2233
        %v2240 = vadd.f32 %v2095, %v2235
        %v2241 = vld [vmem:[%s11] sm:$0x1]
        %v2242 = vld [vmem:[%s12] sm:$0x1]
        %v2244 = vlaneseq
        %v2245 = vshrl.u32 %v2244, 7
        %v2246 = vsub.s32 0, %v2245
        %v2247 = vrot.slane %v2241, %v2246
        %v2249 = vmul.f32 %v2239, %v2247
        %v2251 = vlaneseq
        %v2252 = vshrl.u32 %v2251, 7
        %v2253 = vsub.s32 0, %v2252
        %v2254 = vrot.slane %v2242, %v2253
        %v2256 = vadd.f32 %v2249, %v2254
        %v2257 = vmul.f32 %v2240, %v2247
        %v2258 = vadd.f32 %v2257, %v2254
        %v2259 = vmax.f32 %v2256, %v2258
        %v2260 = vmax.f32 %v2259, 0.0
        %v2261 = vld [vmem:[%s13] sm:$0xf]
        %v2262 = vmul.f32 %v2260, %v2261
        %v2263 = vld [vmem:[%s14] sm:$0xf]
        %v2264 = vadd.f32 %v2262, %v2263
        %2265 = vst [vmem:[%s544] sm:$0xf] %v2264
        %s2266 = sand.u32 %s360, 1
        %s2267 = scalar_lea.sflag [#allocation7], %s2266
        %s2268 = sand.u32 %s360, 1
        %s2269 = smul.addr %s2268, 4
        %s2270 = scalar_lea.vmem [#allocation13], %s2269
        // Predicated region
        $region97: #{tpu_custom_call.1} parent=79 // pred_check
          %p2271 = pneg %p370
        $region98: #{tpu_custom_call.1} parent=79 // pred_check_branch
          %2273 = sbr.rel (%p2271) target = $region100
        $region99: #{tpu_custom_call.1} parent=79 // pred_region
          %s2275 = ssub.s32 64, 64
          %2276 = vsyncadd %s2267, %s2275
          %s2277 = smul.addr %s32, 64
          %s2278 = scalar_lea.hbm %s15, %s2277
          %s2280 = sshll.u32 %s2270, 4
          %s2281 = int_to_ptr.vmem [resolvable:$true] %s2280
          %2283 = dma.vmem_to_hbm [thread:$0]  %s2281, 64, %s2278, %s2267
        $region100: #{tpu_custom_call.1} parent=79 // pred_fallthru
          _
      $region80: #{tpu_custom_call.1} parent=5 // pred_fallthru
        _
      %p2284 = scmp.le.s32.totalorder 2, %s27
      // Predicated region
      $region101: #{tpu_custom_call.1} parent=5 // pred_check
        %p2285 = pneg %p2284
      $region102: #{tpu_custom_call.1} parent=5 // pred_check_branch
        %2287 = sbr.rel (%p2285) target = $region104
      $region103: #{tpu_custom_call.1} parent=5 // pred_region
        %s2288 = ssub.s32 %s27, 2
        // Predicated region
        $region105: #{tpu_custom_call.1} parent=103 // pred_check
          %p2289 = pneg %p376
        $region106: #{tpu_custom_call.1} parent=103 // pred_check_branch
          %2291 = sbr.rel (%p2289) target = $region108
        $region107: #{tpu_custom_call.1} parent=103 // pred_region
          %s2292 = sand.u32 %s361, 1
          %s2293 = scalar_lea.sflag [#allocation7], %s2292
          %s2294 = sand.u32 %s361, 1
          %s2295 = smul.addr %s2294, 4
          %s2296 = scalar_lea.vmem [#allocation13], %s2295
          %2297 = dma.done %s2293, 64
        $region108: #{tpu_custom_call.1} parent=103 // pred_fallthru
          _
      $region104: #{tpu_custom_call.1} parent=5 // pred_fallthru
        _
    $region6: #{tpu_custom_call.1} parent=1 // loop_footer
      %s31 = sadd.s32 1, %s27
    $region7: #{tpu_custom_call.1} parent=1 // loop_footer_branch
      %26 = sbr.rel target = $region3
    $region8: #{tpu_custom_call.1} parent=1 // loop_exit
      _
    %2298 = vsyncpa [#allocation6], 1
    %s2299 = scalar_lea.sflag [#allocation6], 1
    %2300 = vsyncpa %s2299, 1
    %2301 = vsyncpa [#allocation9], 1
    %2302 = vsyncpa [#allocation12], 1
    %2303 = vsyncpa [#allocation7], 1
    %s2304 = scalar_lea.sflag [#allocation7], 1
    %2305 = vsyncpa %s2304, 1

</llo_original>
